<compile_context>
chip_gen: v7x
topology: tpu7x:2x2x1
jax: 0.10.0
libtpu: 0.0.40
codegen_flags: <defaults>
</compile_context>

<pallas_src>
import numpy as np
import jax
import jax.numpy as jnp
from jax import lax
from jax.experimental import pallas as pl
from jax.experimental.pallas import tpu as pltpu


# ---------------------------------------------------------------------------
# Constant builder (tiny, plain NumPy)
# ---------------------------------------------------------------------------

def bilinear_matrix(in_size, out_size):
    """(out_size, in_size) bilinear interpolation matrix, align_corners=True."""
    o = np.arange(out_size, dtype=np.float64)
    if out_size > 1 and in_size > 1:
        src = o * (in_size - 1) / (out_size - 1)
    else:
        src = np.zeros_like(o)
    i0 = np.clip(np.floor(src).astype(np.int64), 0, in_size - 1)
    i1 = np.clip(i0 + 1, 0, in_size - 1)
    frac = (src - i0).astype(np.float32)
    M = np.zeros((out_size, in_size), dtype=np.float32)
    M[np.arange(out_size), i0] += (1.0 - frac)
    M[np.arange(out_size), i1] += frac
    return M


# ---------------------------------------------------------------------------
# Pallas kernel
# ---------------------------------------------------------------------------

def _make_kernel(num_branches, aggr_method, bc, H, W, matmul_dtype):
    if aggr_method not in ('max', 'sum'):
        raise NotImplementedError(aggr_method)
    # 'sum' accumulates rounding error across branches, so keep the intermediate of the
    # two upsample matmuls in f32 there; 'max' uses bf16 for full MXU rate.
    mid_dtype = matmul_dtype if aggr_method == 'max' else jnp.float32

    def even_col_onehot(Wc):
        # (Wc-1, Wc//2) f32 one-hot built in-kernel (no HBM constant, no double buffer):
        # (m @ S)[:, c] = m[:, 2*c]  -- exact value selection.
        j = lax.broadcasted_iota(jnp.int32, (Wc - 1, Wc // 2), 0)
        c = lax.broadcasted_iota(jnp.int32, (Wc - 1, Wc // 2), 1)
        return jnp.where(j == 2 * c, 1.0, 0.0).astype(jnp.float32)

    def even_row_onehot(Hc):
        # (Hc//2, Hc-1) f32 one-hot: (S @ m)[r, :] = m[2*r, :]
        r = lax.broadcasted_iota(jnp.int32, (Hc // 2, Hc - 1), 0)
        j = lax.broadcasted_iota(jnp.int32, (Hc // 2, Hc - 1), 1)
        return jnp.where(j == 2 * r, 1.0, 0.0).astype(jnp.float32)

    def pool_cols(x, Wc):
        # Exact 2-wide max pool along lanes, batched over all bc packed channels:
        # shifted-slice pair-max (VPU) + ONE exact f32 one-hot compaction matmul.
        # (Static slices instead of pltpu.roll: same VPU-side cost, and it keeps working
        #  for pooled widths < 128 lanes at the deeper levels.)
        m = jnp.maximum(x[:, :-1], x[:, 1:])                     # (R, Wc-1), pairs on even cols
        return jnp.dot(m, even_col_onehot(Wc), preferred_element_type=jnp.float32)

    def pool_rows(x, Hc):
        # Exact 2-tall max pool along sublanes.  The pair-max is batched (rows mixing
        # adjacent channels are odd local rows and never selected); the compaction stays
        # per channel so it never crosses channel boundaries.
        m = jnp.maximum(x[:-1, :], x[1:, :])                     # (R-1, Wc)
        sel = even_row_onehot(Hc)                                # (Hc//2, Hc-1)
        parts = [
            jnp.dot(sel, m[c * Hc:c * Hc + Hc - 1, :], preferred_element_type=jnp.float32)
            for c in range(bc)
        ]
        return jnp.concatenate(parts, axis=0) if bc > 1 else parts[0]

    def kernel(*refs):
        pos = 0
        f0_ref = refs[pos]; pos += 1
        branches = []
        for _ in range(1, num_branches):
            branches.append((refs[pos], refs[pos + 1], refs[pos + 2]))
            pos += 3
        out_refs = refs[pos:]

        # ---- aggregation: bilinear upsample (two MXU matmuls/branch) + f32 max / sum ----
        acc = f0_ref[...].astype(jnp.float32)                    # (bc*H, W)
        for bi, (f_ref, uh_ref, uwt_ref) in enumerate(branches, start=1):
            h_i = H >> bi
            uh = uh_ref[...]                                     # (H, h_i)
            uwt = uwt_ref[...]                                   # (w_i, W)
            if H >= W:
                # per-channel row upsample, then ONE channel-batched column matmul
                parts = [jnp.dot(uh, f_ref[c * h_i:(c + 1) * h_i, :],
                                 preferred_element_type=jnp.float32) for c in range(bc)]
                t = jnp.concatenate(parts, axis=0) if bc > 1 else parts[0]     # (bc*H, w_i)
                up = jnp.dot(t.astype(mid_dtype), uwt.astype(mid_dtype),
                             preferred_element_type=jnp.float32)               # (bc*H, W)
            else:
                # ONE channel-batched column upsample, then per-channel row matmuls
                t = jnp.dot(f_ref[...], uwt,
                            preferred_element_type=jnp.float32).astype(mid_dtype)
                uh_m = uh.astype(mid_dtype)
                parts = [jnp.dot(uh_m, t[c * h_i:(c + 1) * h_i, :],
                                 preferred_element_type=jnp.float32) for c in range(bc)]
                up = jnp.concatenate(parts, axis=0) if bc > 1 else parts[0]    # (bc*H, W)
            acc = jnp.maximum(acc, up) if aggr_method == 'max' else acc + up
        out_refs[0][...] = acc.astype(out_refs[0].dtype)

        # ---- cascaded exact 2x2 max pools; axis order follows the aspect ratio ----
        prev, Hc, Wc = acc, H, W
        for lvl in range(1, num_branches):
            if H >= W:          # columns first is cheaper when H >= W
                prev = pool_cols(prev, Wc); Wc //= 2
                prev = pool_rows(prev, Hc); Hc //= 2
            else:               # rows first when W > H
                prev = pool_rows(prev, Hc); Hc //= 2
                prev = pool_cols(prev, Wc); Wc //= 2
            out_refs[lvl][...] = prev.astype(out_refs[lvl].dtype)

    return kernel


# ---------------------------------------------------------------------------
# Block-channel / VMEM heuristics
# ---------------------------------------------------------------------------

def _pick_block_channels(NC, H, W, num_branches, io_sz, br_sz, out_sz, block_budget):
    """Channels packed per grid step: VMEM-honest, tile-legal, pipeline-friendly."""
    hw = H * W
    branch_hw = sum(hw >> (2 * i) for i in range(1, num_branches))
    per_chan = (2 * hw * io_sz                  # features[0] block (double-buffered)
                + 2 * branch_hw * br_sz         # branch feature blocks
                + 2 * hw * out_sz               # full-res output block
                + 2 * branch_hw * out_sz        # pooled output blocks
                + 5 * hw * 4)                   # live in-kernel f32 intermediates
    const = 0
    for i in range(1, num_branches):
        h_i, w_i = H >> i, W >> i
        const += 2 * br_sz * (H * h_i + w_i * W)          # bilinear matrices (x2 buffers)
        Hp, Wp = H >> (i - 1), W >> (i - 1)
        const += 4 * (Wp * (Wp // 2) + (Hp // 2) * Hp)    # in-kernel one-hot temporaries
    avail = max(block_budget - const, per_chan)
    cap = int(max(1, min(16, avail // per_chan)))         # 16 also bounds the unroll

    # Block legality: second-minor dim (bc * height) of every streamed block must be a
    # multiple of its dtype's sublane tile (8 for 4-byte, 16 for 2-byte) unless the
    # block covers the whole array (bc == NC).
    streams = [(H, io_sz), (H, out_sz)]
    for i in range(1, num_branches):
        streams += [(H >> i, br_sz), (H >> i, out_sz)]

    def legal(d):
        return d == NC or all((d * h) % max(8, 32 // sz) == 0 for h, sz in streams)

    divisors = [d for d in range(1, NC + 1) if NC % d == 0 and legal(d)]
    feasible = [d for d in divisors if d <= cap] or [divisors[0]]

    # Smallest bc whose full-res block reaches ~0.5 MiB while keeping >= 8 (then >= 4)
    # grid steps; tiny problems fall back to the largest bc that still leaves >= 4 / 2
    # steps so the double-buffered pipeline has something to overlap.
    big_block = 512 * 1024
    for min_steps in (8, 4):
        for d in feasible:
            if NC // d >= min_steps and d * hw * max(io_sz, out_sz) >= big_block:
                return d
    for min_steps in (4, 2, 1):
        cand = [d for d in feasible if NC // d >= min_steps]
        if cand:
            return max(cand)
    return feasible[-1]


# ---------------------------------------------------------------------------
# Wrapper
# ---------------------------------------------------------------------------

def multiscale_sum(features, aggr_method='max',
                   matmul_dtype=jnp.bfloat16, io_dtype=jnp.bfloat16):
    """Pallas TPU MultiscaleSum.forward.

    features: list of NCHW arrays; features[i] has spatial size (H // 2**i, W // 2**i).
    io_dtype: dtype used to stream features[0] and the outputs through HBM (the kernel
              is HBM-bound on every TPU generation; bf16 roughly halves the dominant
              traffic).  Pass jnp.float32 for full-precision I/O.
    """
    num_branches = len(features)
    N, C, H, W = features[0].shape
    s_max = 2 ** (num_branches - 1)
    assert H % s_max == 0 and W % s_max == 0, (
        "H, W must be divisible by 2**(num_branches-1) to match max_pool2d(k=s, stride=s)")
    for i, f in enumerate(features):
        assert f.shape == (N, C, H >> i, W >> i), (i, f.shape)
    NC = N * C

    # Generation-aware VMEM budget (v7x: 64 MiB physical per TC; v5e/v6e: 128 MiB).
    MiB = 1024 * 1024
    try:
        vmem_cap = int(pltpu.get_tpu_info().vmem_capacity_bytes)
    except Exception:
        vmem_cap = 64 * MiB                    # conservative (v7x-sized) fallback
    if vmem_cap <= 80 * MiB:                   # v7x class
        block_budget = int(0.40 * vmem_cap)
        vmem_limit = int(0.72 * vmem_cap)
    else:                                       # v5e / v6e class
        block_budget = int(0.55 * vmem_cap)
        vmem_limit = int(0.78 * vmem_cap)

    io_sz = np.dtype(io_dtype).itemsize
    br_sz = np.dtype(matmul_dtype).itemsize
    bc = _pick_block_channels(NC, H, W, num_branches, io_sz, br_sz, io_sz, block_budget)

    # All arrays are streamed as 2-D (NC*h, w) slabs so the kernel batches the packed
    # channels through the matmul M dimension without any in-kernel reshapes.
    inputs = [jnp.asarray(features[0], io_dtype).reshape(NC * H, W)]
    in_specs = [pl.BlockSpec((bc * H, W), lambda n: (n, 0))]
    for i in range(1, num_branches):
        h_i, w_i = H >> i, W >> i
        inputs += [
            jnp.asarray(features[i], matmul_dtype).reshape(NC * h_i, w_i),
            jnp.asarray(bilinear_matrix(h_i, H), matmul_dtype),        # (H, h_i)
            jnp.asarray(bilinear_matrix(w_i, W).T, matmul_dtype),      # (w_i, W)
        ]
        in_specs += [
            pl.BlockSpec((bc * h_i, w_i), lambda n: (n, 0)),
            pl.BlockSpec((H, h_i), lambda n: (0, 0)),                  # resident constants
            pl.BlockSpec((w_i, W), lambda n: (0, 0)),
        ]

    # TODO(synk): deeper pooled levels with w_i < 128 lanes could be packed lane-dense
    # (NC, h_i*w_i) for unmasked stores; kept as (NC*h_i, w_i) for simplicity.
    out_shapes = [jax.ShapeDtypeStruct((NC * H, W), io_dtype)]
    out_specs = [pl.BlockSpec((bc * H, W), lambda n: (n, 0))]
    for i in range(1, num_branches):
        h_i, w_i = H >> i, W >> i
        out_shapes.append(jax.ShapeDtypeStruct((NC * h_i, w_i), io_dtype))
        out_specs.append(pl.BlockSpec((bc * h_i, w_i), lambda n: (n, 0)))

    kernel = _make_kernel(num_branches, aggr_method, bc, H, W, matmul_dtype)
    outs = pl.pallas_call(
        kernel,
        out_shape=tuple(out_shapes),
        grid=(NC // bc,),
        in_specs=in_specs,
        out_specs=tuple(out_specs),
        compiler_params=pltpu.CompilerParams(
            dimension_semantics=("parallel",),
            vmem_limit_bytes=vmem_limit,
        ),
    )(*inputs)
    return [o.reshape(N, C, H >> i, W >> i) for i, o in enumerate(outs)]


# ---------------------------------------------------------------------------
# Pure NumPy reference for the sanity check
# ---------------------------------------------------------------------------

def reference(features, aggr_method='max'):
    feats = [np.asarray(f, np.float64) for f in features]
    N, C, H, W = feats[0].shape
    out = feats[0].copy()
    for i in range(1, len(feats)):
        x = feats[i]
        Mh = bilinear_matrix(x.shape[2], H).astype(np.float64)
        Mw = bilinear_matrix(x.shape[3], W).astype(np.float64)
        up = np.einsum('ph,nchw,qw->ncpq', Mh, x, Mw)
        out = np.maximum(out, up) if aggr_method == 'max' else out + up
    outs = [out]
    for i in range(1, len(feats)):
        s = 2 ** i
        outs.append(out.reshape(N, C, H // s, s, W // s, s).max(axis=(3, 5)))
    return outs


if __name__ == "__main__":
    def run_case(case_id, N, C, H, W, num_branches, aggr, io_dtype):
        keys = jax.random.split(jax.random.fold_in(jax.random.PRNGKey(0), case_id),
                                num_branches)
        feats = [jax.random.normal(keys[i], (N, C, H >> i, W >> i), dtype=jnp.float32)
                 for i in range(num_branches)]

        outs = multiscale_sum(feats, aggr_method=aggr, io_dtype=io_dtype)
        outs = [jax.block_until_ready(o) for o in outs]
        outs_np = [np.asarray(o.astype(jnp.float32)) for o in outs]

        # f64 reference; the kernel runs the upsample matmuls in bf16 (and optionally
        # streams I/O in bf16) -> loose tolerance.
        refs = reference([np.asarray(f) for f in feats], aggr)
        for o, r in zip(outs_np, refs):
            assert o.shape == r.shape, (o.shape, r.shape)
            np.testing.assert_allclose(o, r, rtol=5e-2, atol=5e-2)

        # Pooled outputs must equal max-pooling the kernel's own full-res output.  With
        # f32 I/O the in-kernel one-hot selection is exact (tight tolerance); with bf16
        # I/O a value on a bf16 rounding boundary may flip by one ulp, so allow ~1 ulp.
        out0 = outs_np[0]
        exact = np.dtype(io_dtype).itemsize == 4
        for i in range(1, num_branches):
            s = 2 ** i
            expect = out0.reshape(N, C, H // s, s, W // s, s).max(axis=(3, 5))
            if exact:
                np.testing.assert_allclose(outs_np[i], expect, rtol=0, atol=1e-6)
            else:
                np.testing.assert_allclose(outs_np[i], expect, rtol=1e-2, atol=1e-5)

    # Case 0: H >= W path (columns-first pooling), 'max', full-precision f32 I/O.
    run_case(0, 2, 4, 32, 32, 3, 'max', jnp.float32)
    # Case 1: W > H path (rows-first pooling), 'sum', default bf16 I/O streaming.
    run_case(1, 2, 4, 32, 64, 3, 'sum', jnp.bfloat16)

    print("KERNEL_OK")
</pallas_src>

<mosaic_0001>
module attributes {stable_mosaic.version = 11 : i64} {
  func.func @kernel(%arg0: i32, %arg1: memref<64x32xf32, #tpu.memory_space<vmem>>, %arg2: memref<32x16xbf16, #tpu.memory_space<vmem>>, %arg3: memref<32x16xbf16, #tpu.memory_space<vmem>>, %arg4: memref<16x32xbf16, #tpu.memory_space<vmem>>, %arg5: memref<16x8xbf16, #tpu.memory_space<vmem>>, %arg6: memref<32x8xbf16, #tpu.memory_space<vmem>>, %arg7: memref<8x32xbf16, #tpu.memory_space<vmem>>, %arg8: memref<64x32xf32, #tpu.memory_space<vmem>>, %arg9: memref<32x16xf32, #tpu.memory_space<vmem>>, %arg10: memref<16x8xf32, #tpu.memory_space<vmem>>) attributes {dimension_semantics = [#tpu.dimension_semantics<parallel>], iteration_bounds = array<i64: 4>, scalar_prefetch = 0 : i64, scratch_operands = 0 : i64, tpu.core_type = #tpu.core_type<tc>, window_params = [{transform_indices = @transform_0, window_bounds = array<i64: 64, 32>}, {transform_indices = @transform_1, window_bounds = array<i64: 32, 16>}, {pipeline_mode = #tpu.pipeline_mode<synchronous>, transform_indices = @transform_2, window_bounds = array<i64: 32, 16>}, {pipeline_mode = #tpu.pipeline_mode<synchronous>, transform_indices = @transform_3, window_bounds = array<i64: 16, 32>}, {transform_indices = @transform_4, window_bounds = array<i64: 16, 8>}, {pipeline_mode = #tpu.pipeline_mode<synchronous>, transform_indices = @transform_5, window_bounds = array<i64: 32, 8>}, {pipeline_mode = #tpu.pipeline_mode<synchronous>, transform_indices = @transform_6, window_bounds = array<i64: 8, 32>}, {transform_indices = @transform_7, window_bounds = array<i64: 64, 32>}, {transform_indices = @transform_8, window_bounds = array<i64: 32, 16>}, {transform_indices = @transform_9, window_bounds = array<i64: 16, 8>}]} {
    %c0 = arith.constant 0 : index
    %c0_0 = arith.constant 0 : index
    %0 = vector.load %arg1[%c0, %c0_0] : memref<64x32xf32, #tpu.memory_space<vmem>>, vector<64x32xf32>
    %c0_1 = arith.constant 0 : index
    %c0_2 = arith.constant 0 : index
    %1 = vector.load %arg3[%c0_1, %c0_2] : memref<32x16xbf16, #tpu.memory_space<vmem>>, vector<32x16xbf16>
    %c0_3 = arith.constant 0 : index
    %c0_4 = arith.constant 0 : index
    %2 = vector.load %arg4[%c0_3, %c0_4] : memref<16x32xbf16, #tpu.memory_space<vmem>>, vector<16x32xbf16>
    %c0_5 = arith.constant 0 : index
    %c0_6 = arith.constant 0 : index
    %3 = vector.load %arg2[%c0_5, %c0_6] : memref<32x16xbf16, #tpu.memory_space<vmem>>, vector<16x16xbf16>
    %cst = arith.constant dense<0.000000e+00> : vector<32x16xf32>
    %4 = tpu.matmul %1, %3, %cst {dimension_numbers = #tpu.dot_dimension_numbers<[1], [0], [0], [1], [0, 0, 1, 1], [], []>} : vector<32x16xbf16>, vector<16x16xbf16>, vector<32x16xf32> -> vector<32x16xf32>
    %c16 = arith.constant 16 : index
    %c0_7 = arith.constant 0 : index
    %5 = vector.load %arg2[%c16, %c0_7] : memref<32x16xbf16, #tpu.memory_space<vmem>>, vector<16x16xbf16>
    %cst_8 = arith.constant dense<0.000000e+00> : vector<32x16xf32>
    %6 = tpu.matmul %1, %5, %cst_8 {dimension_numbers = #tpu.dot_dimension_numbers<[1], [0], [0], [1], [0, 0, 1, 1], [], []>} : vector<32x16xbf16>, vector<16x16xbf16>, vector<32x16xf32> -> vector<32x16xf32>
    %7 = tpu.concatenate %4, %6 in 0 : vector<32x16xf32>, vector<32x16xf32> -> vector<64x16xf32>
    %8 = arith.truncf %7 : vector<64x16xf32> to vector<64x16xbf16>
    %cst_9 = arith.constant dense<0.000000e+00> : vector<64x32xf32>
    %9 = tpu.matmul %8, %2, %cst_9 {dimension_numbers = #tpu.dot_dimension_numbers<[1], [0], [0], [1], [0, 0, 1, 1], [], []>} : vector<64x16xbf16>, vector<16x32xbf16>, vector<64x32xf32> -> vector<64x32xf32>
    %10 = arith.maximumf %0, %9 : vector<64x32xf32>
    %c0_10 = arith.constant 0 : index
    %c0_11 = arith.constant 0 : index
    %11 = vector.load %arg6[%c0_10, %c0_11] : memref<32x8xbf16, #tpu.memory_space<vmem>>, vector<32x8xbf16>
    %c0_12 = arith.constant 0 : index
    %c0_13 = arith.constant 0 : index
    %12 = vector.load %arg7[%c0_12, %c0_13] : memref<8x32xbf16, #tpu.memory_space<vmem>>, vector<8x32xbf16>
    %c0_14 = arith.constant 0 : index
    %c0_15 = arith.constant 0 : index
    %13 = vector.load %arg5[%c0_14, %c0_15] : memref<16x8xbf16, #tpu.memory_space<vmem>>, vector<8x8xbf16>
    %cst_16 = arith.constant dense<0.000000e+00> : vector<32x8xf32>
    %14 = tpu.matmul %11, %13, %cst_16 {dimension_numbers = #tpu.dot_dimension_numbers<[1], [0], [0], [1], [0, 0, 1, 1], [], []>} : vector<32x8xbf16>, vector<8x8xbf16>, vector<32x8xf32> -> vector<32x8xf32>
    %c8 = arith.constant 8 : index
    %c0_17 = arith.constant 0 : index
    %15 = vector.load %arg5[%c8, %c0_17] : memref<16x8xbf16, #tpu.memory_space<vmem>>, vector<8x8xbf16>
    %cst_18 = arith.constant dense<0.000000e+00> : vector<32x8xf32>
    %16 = tpu.matmul %11, %15, %cst_18 {dimension_numbers = #tpu.dot_dimension_numbers<[1], [0], [0], [1], [0, 0, 1, 1], [], []>} : vector<32x8xbf16>, vector<8x8xbf16>, vector<32x8xf32> -> vector<32x8xf32>
    %17 = tpu.concatenate %14, %16 in 0 : vector<32x8xf32>, vector<32x8xf32> -> vector<64x8xf32>
    %18 = arith.truncf %17 : vector<64x8xf32> to vector<64x8xbf16>
    %cst_19 = arith.constant dense<0.000000e+00> : vector<64x32xf32>
    %19 = tpu.matmul %18, %12, %cst_19 {dimension_numbers = #tpu.dot_dimension_numbers<[1], [0], [0], [1], [0, 0, 1, 1], [], []>} : vector<64x8xbf16>, vector<8x32xbf16>, vector<64x32xf32> -> vector<64x32xf32>
    %20 = arith.maximumf %10, %19 : vector<64x32xf32>
    %c0_20 = arith.constant 0 : index
    %c0_21 = arith.constant 0 : index
    %21 = vector.load %arg8[%c0_20, %c0_21] : memref<64x32xf32, #tpu.memory_space<vmem>>, vector<64x32xf32>
    tpu.vector_store %arg8[%c0_20, %c0_21], %20 {strides = array<i32>} : memref<64x32xf32, #tpu.memory_space<vmem>>, vector<64x32xf32>,
    %22 = vector.extract_strided_slice %20 {offsets = [0, 0], sizes = [64, 31], strides = [1, 1]} : vector<64x32xf32> to vector<64x31xf32>
    %23 = vector.extract_strided_slice %20 {offsets = [0, 1], sizes = [64, 31], strides = [1, 1]} : vector<64x32xf32> to vector<64x31xf32>
    %24 = arith.maximumf %22, %23 : vector<64x31xf32>
    %25 = tpu.iota {dimensions = array<i32: 0>} : vector<31x16xi32>
    %26 = tpu.iota {dimensions = array<i32: 1>} : vector<31x16xi32>
    %c2_i32 = arith.constant 2 : i32
    %27 = vector.broadcast %c2_i32 : i32 to vector<31x16xi32>
    %28 = arith.muli %27, %26 : vector<31x16xi32>
    %29 = arith.cmpi eq, %25, %28 : vector<31x16xi32>
    %cst_22 = arith.constant 1.000000e+00 : f32
    %cst_23 = arith.constant 0.000000e+00 : f32
    %30 = vector.broadcast %cst_22 : f32 to vector<31x16xf32>
    %31 = vector.broadcast %cst_23 : f32 to vector<31x16xf32>
    %32 = arith.select %29, %30, %31 : vector<31x16xi1>, vector<31x16xf32>
    %cst_24 = arith.constant dense<0.000000e+00> : vector<64x16xf32>
    %33 = tpu.matmul %24, %32, %cst_24 {dimension_numbers = #tpu.dot_dimension_numbers<[1], [0], [0], [1], [0, 0, 1, 1], [], []>} : vector<64x31xf32>, vector<31x16xf32>, vector<64x16xf32> -> vector<64x16xf32>
    %34 = vector.extract_strided_slice %33 {offsets = [0, 0], sizes = [63, 16], strides = [1, 1]} : vector<64x16xf32> to vector<63x16xf32>
    %35 = vector.extract_strided_slice %33 {offsets = [1, 0], sizes = [63, 16], strides = [1, 1]} : vector<64x16xf32> to vector<63x16xf32>
    %36 = arith.maximumf %34, %35 : vector<63x16xf32>
    %37 = tpu.iota {dimensions = array<i32: 0>} : vector<16x31xi32>
    %38 = tpu.iota {dimensions = array<i32: 1>} : vector<16x31xi32>
    %c2_i32_25 = arith.constant 2 : i32
    %39 = vector.broadcast %c2_i32_25 : i32 to vector<16x31xi32>
    %40 = arith.muli %39, %37 : vector<16x31xi32>
    %41 = arith.cmpi eq, %38, %40 : vector<16x31xi32>
    %cst_26 = arith.constant 1.000000e+00 : f32
    %cst_27 = arith.constant 0.000000e+00 : f32
    %42 = vector.broadcast %cst_26 : f32 to vector<16x31xf32>
    %43 = vector.broadcast %cst_27 : f32 to vector<16x31xf32>
    %44 = arith.select %41, %42, %43 : vector<16x31xi1>, vector<16x31xf32>
    %45 = vector.extract_strided_slice %36 {offsets = [0, 0], sizes = [31, 16], strides = [1, 1]} : vector<63x16xf32> to vector<31x16xf32>
    %cst_28 = arith.constant dense<0.000000e+00> : vector<16x16xf32>
    %46 = tpu.matmul %44, %45, %cst_28 {dimension_numbers = #tpu.dot_dimension_numbers<[1], [0], [0], [1], [0, 0, 1, 1], [], []>} : vector<16x31xf32>, vector<31x16xf32>, vector<16x16xf32> -> vector<16x16xf32>
    %47 = vector.extract_strided_slice %36 {offsets = [32, 0], sizes = [31, 16], strides = [1, 1]} : vector<63x16xf32> to vector<31x16xf32>
    %cst_29 = arith.constant dense<0.000000e+00> : vector<16x16xf32>
    %48 = tpu.matmul %44, %47, %cst_29 {dimension_numbers = #tpu.dot_dimension_numbers<[1], [0], [0], [1], [0, 0, 1, 1], [], []>} : vector<16x31xf32>, vector<31x16xf32>, vector<16x16xf32> -> vector<16x16xf32>
    %49 = tpu.concatenate %46, %48 in 0 : vector<16x16xf32>, vector<16x16xf32> -> vector<32x16xf32>
    %c0_30 = arith.constant 0 : index
    %c0_31 = arith.constant 0 : index
    %50 = vector.load %arg9[%c0_30, %c0_31] : memref<32x16xf32, #tpu.memory_space<vmem>>, vector<32x16xf32>
    tpu.vector_store %arg9[%c0_30, %c0_31], %49 {strides = array<i32>} : memref<32x16xf32, #tpu.memory_space<vmem>>, vector<32x16xf32>,
    %51 = vector.extract_strided_slice %49 {offsets = [0, 0], sizes = [32, 15], strides = [1, 1]} : vector<32x16xf32> to vector<32x15xf32>
    %52 = vector.extract_strided_slice %49 {offsets = [0, 1], sizes = [32, 15], strides = [1, 1]} : vector<32x16xf32> to vector<32x15xf32>
    %53 = arith.maximumf %51, %52 : vector<32x15xf32>
    %54 = tpu.iota {dimensions = array<i32: 0>} : vector<15x8xi32>
    %55 = tpu.iota {dimensions = array<i32: 1>} : vector<15x8xi32>
    %c2_i32_32 = arith.constant 2 : i32
    %56 = vector.broadcast %c2_i32_32 : i32 to vector<15x8xi32>
    %57 = arith.muli %56, %55 : vector<15x8xi32>
    %58 = arith.cmpi eq, %54, %57 : vector<15x8xi32>
    %cst_33 = arith.constant 1.000000e+00 : f32
    %cst_34 = arith.constant 0.000000e+00 : f32
    %59 = vector.broadcast %cst_33 : f32 to vector<15x8xf32>
    %60 = vector.broadcast %cst_34 : f32 to vector<15x8xf32>
    %61 = arith.select %58, %59, %60 : vector<15x8xi1>, vector<15x8xf32>
    %cst_35 = arith.constant dense<0.000000e+00> : vector<32x8xf32>
    %62 = tpu.matmul %53, %61, %cst_35 {dimension_numbers = #tpu.dot_dimension_numbers<[1], [0], [0], [1], [0, 0, 1, 1], [], []>} : vector<32x15xf32>, vector<15x8xf32>, vector<32x8xf32> -> vector<32x8xf32>
    %63 = vector.extract_strided_slice %62 {offsets = [0, 0], sizes = [31, 8], strides = [1, 1]} : vector<32x8xf32> to vector<31x8xf32>
    %64 = vector.extract_strided_slice %62 {offsets = [1, 0], sizes = [31, 8], strides = [1, 1]} : vector<32x8xf32> to vector<31x8xf32>
    %65 = arith.maximumf %63, %64 : vector<31x8xf32>
    %66 = tpu.iota {dimensions = array<i32: 0>} : vector<8x15xi32>
    %67 = tpu.iota {dimensions = array<i32: 1>} : vector<8x15xi32>
    %c2_i32_36 = arith.constant 2 : i32
    %68 = vector.broadcast %c2_i32_36 : i32 to vector<8x15xi32>
    %69 = arith.muli %68, %66 : vector<8x15xi32>
    %70 = arith.cmpi eq, %67, %69 : vector<8x15xi32>
    %cst_37 = arith.constant 1.000000e+00 : f32
    %cst_38 = arith.constant 0.000000e+00 : f32
    %71 = vector.broadcast %cst_37 : f32 to vector<8x15xf32>
    %72 = vector.broadcast %cst_38 : f32 to vector<8x15xf32>
    %73 = arith.select %70, %71, %72 : vector<8x15xi1>, vector<8x15xf32>
    %74 = vector.extract_strided_slice %65 {offsets = [0, 0], sizes = [15, 8], strides = [1, 1]} : vector<31x8xf32> to vector<15x8xf32>
    %cst_39 = arith.constant dense<0.000000e+00> : vector<8x8xf32>
    %75 = tpu.matmul %73, %74, %cst_39 {dimension_numbers = #tpu.dot_dimension_numbers<[1], [0], [0], [1], [0, 0, 1, 1], [], []>} : vector<8x15xf32>, vector<15x8xf32>, vector<8x8xf32> -> vector<8x8xf32>
    %76 = vector.extract_strided_slice %65 {offsets = [16, 0], sizes = [15, 8], strides = [1, 1]} : vector<31x8xf32> to vector<15x8xf32>
    %cst_40 = arith.constant dense<0.000000e+00> : vector<8x8xf32>
    %77 = tpu.matmul %73, %76, %cst_40 {dimension_numbers = #tpu.dot_dimension_numbers<[1], [0], [0], [1], [0, 0, 1, 1], [], []>} : vector<8x15xf32>, vector<15x8xf32>, vector<8x8xf32> -> vector<8x8xf32>
    %78 = tpu.concatenate %75, %77 in 0 : vector<8x8xf32>, vector<8x8xf32> -> vector<16x8xf32>
    %c0_41 = arith.constant 0 : index
    %c0_42 = arith.constant 0 : index
    %79 = vector.load %arg10[%c0_41, %c0_42] : memref<16x8xf32, #tpu.memory_space<vmem>>, vector<16x8xf32>
    tpu.vector_store %arg10[%c0_41, %c0_42], %78 {strides = array<i32>} : memref<16x8xf32, #tpu.memory_space<vmem>>, vector<16x8xf32>,
    return
  }
  func.func @transform_0(%arg0: i32) -> (i32, i32) {
    %c0_i32 = arith.constant 0 : i32
    %c0_i32_0 = arith.constant 0 : i32
    return %arg0, %c0_i32 : i32, i32
  }
  func.func @transform_1(%arg0: i32) -> (i32, i32) {
    %c0_i32 = arith.constant 0 : i32
    %c0_i32_0 = arith.constant 0 : i32
    return %arg0, %c0_i32 : i32, i32
  }
  func.func @transform_2(%arg0: i32) -> (i32, i32) {
    %c0_i32 = arith.constant 0 : i32
    %c0_i32_0 = arith.constant 0 : i32
    %c0_i32_1 = arith.constant 0 : i32
    return %c0_i32, %c0_i32_0 : i32, i32
  }
  func.func @transform_3(%arg0: i32) -> (i32, i32) {
    %c0_i32 = arith.constant 0 : i32
    %c0_i32_0 = arith.constant 0 : i32
    %c0_i32_1 = arith.constant 0 : i32
    return %c0_i32, %c0_i32_0 : i32, i32
  }
  func.func @transform_4(%arg0: i32) -> (i32, i32) {
    %c0_i32 = arith.constant 0 : i32
    %c0_i32_0 = arith.constant 0 : i32
    return %arg0, %c0_i32 : i32, i32
  }
  func.func @transform_5(%arg0: i32) -> (i32, i32) {
    %c0_i32 = arith.constant 0 : i32
    %c0_i32_0 = arith.constant 0 : i32
    %c0_i32_1 = arith.constant 0 : i32
    return %c0_i32, %c0_i32_0 : i32, i32
  }
  func.func @transform_6(%arg0: i32) -> (i32, i32) {
    %c0_i32 = arith.constant 0 : i32
    %c0_i32_0 = arith.constant 0 : i32
    %c0_i32_1 = arith.constant 0 : i32
    return %c0_i32, %c0_i32_0 : i32, i32
  }
  func.func @transform_7(%arg0: i32) -> (i32, i32) {
    %c0_i32 = arith.constant 0 : i32
    %c0_i32_0 = arith.constant 0 : i32
    return %arg0, %c0_i32 : i32, i32
  }
  func.func @transform_8(%arg0: i32) -> (i32, i32) {
    %c0_i32 = arith.constant 0 : i32
    %c0_i32_0 = arith.constant 0 : i32
    return %arg0, %c0_i32 : i32, i32
  }
  func.func @transform_9(%arg0: i32) -> (i32, i32) {
    %c0_i32 = arith.constant 0 : i32
    %c0_i32_0 = arith.constant 0 : i32
    return %arg0, %c0_i32 : i32, i32
  }
}

</mosaic_0001>

<llo_original>
// kernel: tpu_custom_call.1
$region0: #{tpu_custom_call.1}
  #allocation0 [shape = 'u32[]', space=smem, size = 0x4, offset = 0x4, fixed_abs, tag = 'smem constant byte address 0x4 - core index']
  #allocation1 [shape = 'u32[144,128]{1,0:T(1,128)}', space=vmem, size = 0x12000, scoped, tag = 'internal scratch']
  %s0 = inlined_call_operand.vmem [shape: f32[256,32], index: 0, kind: input, shape index: {}]
  %s1 = inlined_call_operand.vmem [shape: bf16[128,16], index: 1, kind: input, shape index: {}]
  %s2 = inlined_call_operand.vmem [shape: bf16[32,16], index: 2, kind: input, shape index: {}]
  %s3 = inlined_call_operand.vmem [shape: bf16[16,32], index: 3, kind: input, shape index: {}]
  %s4 = inlined_call_operand.vmem [shape: bf16[64,8], index: 4, kind: input, shape index: {}]
  %s5 = inlined_call_operand.vmem [shape: bf16[32,8], index: 5, kind: input, shape index: {}]
  %s6 = inlined_call_operand.vmem [shape: bf16[8,32], index: 6, kind: input, shape index: {}]
  %s7 = inlined_call_operand.vmem [shape: f32[256,32], index: 7, kind: output, shape index: {0}]
  %s8 = inlined_call_operand.vmem [shape: f32[128,16], index: 8, kind: output, shape index: {1}]
  %s9 = inlined_call_operand.vmem [shape: f32[64,8], index: 9, kind: output, shape index: {2}]
  %10 = xla_tuple %s7, %s8, %s9
  %s11 = sld [smem:[#allocation0]]
  $region77: #{tpu_custom_call.1} parent=0
    _
  %s13 = ssub.s32 1, %s11
  %s14 = scalar_select 0, %s13, %s11
  loop: start=0, step=1, limit=6
  $region2: #{tpu_custom_call.1} parent=0 // loop_pre_header
    _
  $region3: #{tpu_custom_call.1} parent=0 // loop_header
    %s16 = sphi 0, %s20
    %p17 = scmp.ge.s32.totalorder %s16, 6
    %s26 = sphi 0, %s28
    %s29 = sphi 0, %s26
    %s30 = sphi 0, %s29
    %s46 = sphi 0, %s30
    %s52 = sphi 0, %s54
    %s55 = sphi 0, %s52
    %s56 = sphi 0, %s55
    %s72 = sphi 0, %s56
    %s76 = sphi 0, %s76
    %s78 = sphi 0, %s76
    %s79 = sphi 0, %s78
    %s93 = sphi 0, %s79
    %s97 = sphi 0, %s97
    %s99 = sphi 0, %s97
    %s100 = sphi 0, %s99
    %s114 = sphi 0, %s100
    %s120 = sphi 0, %s122
    %s123 = sphi 0, %s120
    %s124 = sphi 0, %s123
    %s140 = sphi 0, %s124
    %s144 = sphi 0, %s144
    %s146 = sphi 0, %s144
    %s147 = sphi 0, %s146
    %s161 = sphi 0, %s147
    %s165 = sphi 0, %s165
    %s167 = sphi 0, %s165
    %s168 = sphi 0, %s167
    %s182 = sphi 0, %s168
    %s188 = sphi 0, %s190
    %s191 = sphi 0, %s188
    %s192 = sphi 0, %s191
    %s208 = sphi 0, %s192
    %s214 = sphi 0, %s216
    %s217 = sphi 0, %s214
    %s218 = sphi 0, %s217
    %s234 = sphi 0, %s218
    %s240 = sphi 0, %s242
    %s243 = sphi 0, %s240
    %s244 = sphi 0, %s243
    %s260 = sphi 0, %s244
  $region4: #{tpu_custom_call.1} parent=0 // loop_header_branch
    %19 = sbr.rel (%p17) target = $region8
  $region5: #{tpu_custom_call.1} parent=0 // loop_body
    %s21 = ssub.s32 %s16, 1
    %s22 = ssub.s32 %s16, 2
    %s23 = sadd.s32 %s16, 1
    %s24 = ssub.s32 %s16, %s23
    %p25 = scmp.eq.s32.totalorder %s24, 0
    %s27 = sadd.s32 %s26, 1
    %s28 = scalar_select %p25, %s26, %s27
    %p31 = pneg %p25
    %p32 = scmp.eq.s32.totalorder %s16, 3
    %p33 = por %p31, %p32
    %p34 = scmp.ne.s32.totalorder %s26, %s29
    %p35 = scmp.eq.s32.totalorder %s16, 0
    %p36 = por %p34, %p35
    %p37 = scmp.ne.s32.totalorder %s26, %s29
    %p38 = scmp.eq.s32.totalorder %s21, 3
    %p39 = por %p37, %p38
    %p40 = scmp.ne.s32.totalorder %s29, %s30
    %p41 = scmp.eq.s32.totalorder %s21, 0
    %p42 = por %p40, %p41
    %p43 = scmp.ne.s32.totalorder %s29, %s30
    %p44 = scmp.eq.s32.totalorder %s22, 3
    %p45 = por %p43, %p44
    %p47 = scmp.ne.s32.totalorder %s30, %s46
    %p48 = scmp.eq.s32.totalorder %s22, 0
    %p49 = por %p47, %p48
    %s50 = ssub.s32 %s16, %s23
    %p51 = scmp.eq.s32.totalorder %s50, 0
    %s53 = sadd.s32 %s52, 1
    %s54 = scalar_select %p51, %s52, %s53
    %p57 = pneg %p51
    %p58 = scmp.eq.s32.totalorder %s16, 3
    %p59 = por %p57, %p58
    %p60 = scmp.ne.s32.totalorder %s52, %s55
    %p61 = scmp.eq.s32.totalorder %s16, 0
    %p62 = por %p60, %p61
    %p63 = scmp.ne.s32.totalorder %s52, %s55
    %p64 = scmp.eq.s32.totalorder %s21, 3
    %p65 = por %p63, %p64
    %p66 = scmp.ne.s32.totalorder %s55, %s56
    %p67 = scmp.eq.s32.totalorder %s21, 0
    %p68 = por %p66, %p67
    %p69 = scmp.ne.s32.totalorder %s55, %s56
    %p70 = scmp.eq.s32.totalorder %s22, 3
    %p71 = por %p69, %p70
    %p73 = scmp.ne.s32.totalorder %s56, %s72
    %p74 = scmp.eq.s32.totalorder %s22, 0
    %p75 = por %p73, %p74
    %s77 = sadd.s32 %s76, 1
    %p80 = scmp.eq.s32.totalorder %s16, 3
    %p81 = scmp.ne.s32.totalorder %s76, %s78
    %p82 = scmp.eq.s32.totalorder %s16, 0
    %p83 = por %p81, %p82
    %p84 = scmp.ne.s32.totalorder %s76, %s78
    %p85 = scmp.eq.s32.totalorder %s21, 3
    %p86 = por %p84, %p85
    %p87 = scmp.ne.s32.totalorder %s78, %s79
    %p88 = scmp.eq.s32.totalorder %s21, 0
    %p89 = por %p87, %p88
    %p90 = scmp.ne.s32.totalorder %s78, %s79
    %p91 = scmp.eq.s32.totalorder %s22, 3
    %p92 = por %p90, %p91
    %p94 = scmp.ne.s32.totalorder %s79, %s93
    %p95 = scmp.eq.s32.totalorder %s22, 0
    %p96 = por %p94, %p95
    %s98 = sadd.s32 %s97, 1
    %p101 = scmp.eq.s32.totalorder %s16, 3
    %p102 = scmp.ne.s32.totalorder %s97, %s99
    %p103 = scmp.eq.s32.totalorder %s16, 0
    %p104 = por %p102, %p103
    %p105 = scmp.ne.s32.totalorder %s97, %s99
    %p106 = scmp.eq.s32.totalorder %s21, 3
    %p107 = por %p105, %p106
    %p108 = scmp.ne.s32.totalorder %s99, %s100
    %p109 = scmp.eq.s32.totalorder %s21, 0
    %p110 = por %p108, %p109
    %p111 = scmp.ne.s32.totalorder %s99, %s100
    %p112 = scmp.eq.s32.totalorder %s22, 3
    %p113 = por %p111, %p112
    %p115 = scmp.ne.s32.totalorder %s100, %s114
    %p116 = scmp.eq.s32.totalorder %s22, 0
    %p117 = por %p115, %p116
    %s118 = ssub.s32 %s16, %s23
    %p119 = scmp.eq.s32.totalorder %s118, 0
    %s121 = sadd.s32 %s120, 1
    %s122 = scalar_select %p119, %s120, %s121
    %p125 = pneg %p119
    %p126 = scmp.eq.s32.totalorder %s16, 3
    %p127 = por %p125, %p126
    %p128 = scmp.ne.s32.totalorder %s120, %s123
    %p129 = scmp.eq.s32.totalorder %s16, 0
    %p130 = por %p128, %p129
    %p131 = scmp.ne.s32.totalorder %s120, %s123
    %p132 = scmp.eq.s32.totalorder %s21, 3
    %p133 = por %p131, %p132
    %p134 = scmp.ne.s32.totalorder %s123, %s124
    %p135 = scmp.eq.s32.totalorder %s21, 0
    %p136 = por %p134, %p135
    %p137 = scmp.ne.s32.totalorder %s123, %s124
    %p138 = scmp.eq.s32.totalorder %s22, 3
    %p139 = por %p137, %p138
    %p141 = scmp.ne.s32.totalorder %s124, %s140
    %p142 = scmp.eq.s32.totalorder %s22, 0
    %p143 = por %p141, %p142
    %s145 = sadd.s32 %s144, 1
    %p148 = scmp.eq.s32.totalorder %s16, 3
    %p149 = scmp.ne.s32.totalorder %s144, %s146
    %p150 = scmp.eq.s32.totalorder %s16, 0
    %p151 = por %p149, %p150
    %p152 = scmp.ne.s32.totalorder %s144, %s146
    %p153 = scmp.eq.s32.totalorder %s21, 3
    %p154 = por %p152, %p153
    %p155 = scmp.ne.s32.totalorder %s146, %s147
    %p156 = scmp.eq.s32.totalorder %s21, 0
    %p157 = por %p155, %p156
    %p158 = scmp.ne.s32.totalorder %s146, %s147
    %p159 = scmp.eq.s32.totalorder %s22, 3
    %p160 = por %p158, %p159
    %p162 = scmp.ne.s32.totalorder %s147, %s161
    %p163 = scmp.eq.s32.totalorder %s22, 0
    %p164 = por %p162, %p163
    %s166 = sadd.s32 %s165, 1
    %p169 = scmp.eq.s32.totalorder %s16, 3
    %p170 = scmp.ne.s32.totalorder %s165, %s167
    %p171 = scmp.eq.s32.totalorder %s16, 0
    %p172 = por %p170, %p171
    %p173 = scmp.ne.s32.totalorder %s165, %s167
    %p174 = scmp.eq.s32.totalorder %s21, 3
    %p175 = por %p173, %p174
    %p176 = scmp.ne.s32.totalorder %s167, %s168
    %p177 = scmp.eq.s32.totalorder %s21, 0
    %p178 = por %p176, %p177
    %p179 = scmp.ne.s32.totalorder %s167, %s168
    %p180 = scmp.eq.s32.totalorder %s22, 3
    %p181 = por %p179, %p180
    %p183 = scmp.ne.s32.totalorder %s168, %s182
    %p184 = scmp.eq.s32.totalorder %s22, 0
    %p185 = por %p183, %p184
    %s186 = ssub.s32 %s16, %s23
    %p187 = scmp.eq.s32.totalorder %s186, 0
    %s189 = sadd.s32 %s188, 1
    %s190 = scalar_select %p187, %s188, %s189
    %p193 = pneg %p187
    %p194 = scmp.eq.s32.totalorder %s16, 3
    %p195 = por %p193, %p194
    %p196 = scmp.ne.s32.totalorder %s188, %s191
    %p197 = scmp.eq.s32.totalorder %s16, 0
    %p198 = por %p196, %p197
    %p199 = scmp.ne.s32.totalorder %s188, %s191
    %p200 = scmp.eq.s32.totalorder %s21, 3
    %p201 = por %p199, %p200
    %p202 = scmp.ne.s32.totalorder %s191, %s192
    %p203 = scmp.eq.s32.totalorder %s21, 0
    %p204 = por %p202, %p203
    %p205 = scmp.ne.s32.totalorder %s191, %s192
    %p206 = scmp.eq.s32.totalorder %s22, 3
    %p207 = por %p205, %p206
    %p209 = scmp.ne.s32.totalorder %s192, %s208
    %p210 = scmp.eq.s32.totalorder %s22, 0
    %p211 = por %p209, %p210
    %s212 = ssub.s32 %s16, %s23
    %p213 = scmp.eq.s32.totalorder %s212, 0
    %s215 = sadd.s32 %s214, 1
    %s216 = scalar_select %p213, %s214, %s215
    %p219 = pneg %p213
    %p220 = scmp.eq.s32.totalorder %s16, 3
    %p221 = por %p219, %p220
    %p222 = scmp.ne.s32.totalorder %s214, %s217
    %p223 = scmp.eq.s32.totalorder %s16, 0
    %p224 = por %p222, %p223
    %p225 = scmp.ne.s32.totalorder %s214, %s217
    %p226 = scmp.eq.s32.totalorder %s21, 3
    %p227 = por %p225, %p226
    %p228 = scmp.ne.s32.totalorder %s217, %s218
    %p229 = scmp.eq.s32.totalorder %s21, 0
    %p230 = por %p228, %p229
    %p231 = scmp.ne.s32.totalorder %s217, %s218
    %p232 = scmp.eq.s32.totalorder %s22, 3
    %p233 = por %p231, %p232
    %p235 = scmp.ne.s32.totalorder %s218, %s234
    %p236 = scmp.eq.s32.totalorder %s22, 0
    %p237 = por %p235, %p236
    %s238 = ssub.s32 %s16, %s23
    %p239 = scmp.eq.s32.totalorder %s238, 0
    %s241 = sadd.s32 %s240, 1
    %s242 = scalar_select %p239, %s240, %s241
    %p245 = pneg %p239
    %p246 = scmp.eq.s32.totalorder %s16, 3
    %p247 = por %p245, %p246
    %p248 = scmp.ne.s32.totalorder %s240, %s243
    %p249 = scmp.eq.s32.totalorder %s16, 0
    %p250 = por %p248, %p249
    %p251 = scmp.ne.s32.totalorder %s240, %s243
    %p252 = scmp.eq.s32.totalorder %s21, 3
    %p253 = por %p251, %p252
    %p254 = scmp.ne.s32.totalorder %s243, %s244
    %p255 = scmp.eq.s32.totalorder %s21, 0
    %p256 = por %p254, %p255
    %p257 = scmp.ne.s32.totalorder %s243, %s244
    %p258 = scmp.eq.s32.totalorder %s22, 3
    %p259 = por %p257, %p258
    %p261 = scmp.ne.s32.totalorder %s244, %s260
    %p262 = scmp.eq.s32.totalorder %s22, 0
    %p263 = por %p261, %p262
    %p264 = scmp.le.s32.totalorder 1, %s16
    %p265 = scmp.lt.s32.totalorder %s16, 5
    %p266 = pnand %p264, %p265
    %p267 = pneg %p266
    // Predicated region
    $region9: #{tpu_custom_call.1} parent=5 // pred_check
      _
    $region10: #{tpu_custom_call.1} parent=5 // pred_check_branch
      %269 = sbr.rel (%p266) target = $region12
    $region11: #{tpu_custom_call.1} parent=5 // pred_region
      %s270 = ssub.s32 %s16, 1
      // Predicated region
      $region13: #{tpu_custom_call.1} parent=11 // pred_check
        %p271 = pneg %p89
      $region14: #{tpu_custom_call.1} parent=11 // pred_check_branch
        %273 = sbr.rel (%p271) target = $region16
      $region15: #{tpu_custom_call.1} parent=11 // pred_region
        _
      $region16: #{tpu_custom_call.1} parent=11 // pred_fallthru
        _
      // Predicated region
      $region17: #{tpu_custom_call.1} parent=11 // pred_check
        %p274 = pneg %p110
      $region18: #{tpu_custom_call.1} parent=11 // pred_check_branch
        %276 = sbr.rel (%p274) target = $region20
      $region19: #{tpu_custom_call.1} parent=11 // pred_region
        _
      $region20: #{tpu_custom_call.1} parent=11 // pred_fallthru
        _
      // Predicated region
      $region21: #{tpu_custom_call.1} parent=11 // pred_check
        %p277 = pneg %p157
      $region22: #{tpu_custom_call.1} parent=11 // pred_check_branch
        %279 = sbr.rel (%p277) target = $region24
      $region23: #{tpu_custom_call.1} parent=11 // pred_region
        _
      $region24: #{tpu_custom_call.1} parent=11 // pred_fallthru
        _
      // Predicated region
      $region25: #{tpu_custom_call.1} parent=11 // pred_check
        %p280 = pneg %p178
      $region26: #{tpu_custom_call.1} parent=11 // pred_check_branch
        %282 = sbr.rel (%p280) target = $region28
      $region27: #{tpu_custom_call.1} parent=11 // pred_region
        _
      $region28: #{tpu_custom_call.1} parent=11 // pred_fallthru
        _
    $region12: #{tpu_custom_call.1} parent=5 // pred_fallthru
      _
    %p283 = scmp.lt.s32.totalorder %s16, 4
    // Predicated region
    $region29: #{tpu_custom_call.1} parent=5 // pred_check
      %p284 = pneg %p283
    $region30: #{tpu_custom_call.1} parent=5 // pred_check_branch
      %286 = sbr.rel (%p284) target = $region32
    $region31: #{tpu_custom_call.1} parent=5 // pred_region
      // Predicated region
      $region33: #{tpu_custom_call.1} parent=31 // pred_check
        %p287 = pneg %p36
      $region34: #{tpu_custom_call.1} parent=31 // pred_check_branch
        %289 = sbr.rel (%p287) target = $region36
      $region35: #{tpu_custom_call.1} parent=31 // pred_region
        %s290 = smul.u32 8, %s16
        %p291 = scmp.lt.s32.totalorder %s290, 31
        %s292 = scalar_select %p291, %s290, 31
        %s293 = smul.addr %s292, 8
        %s294 = scalar_lea.vmem %s0, %s293
        %s295 = smul.u32 8, %s16
      $region36: #{tpu_custom_call.1} parent=31 // pred_fallthru
        _
      // Predicated region
      $region37: #{tpu_custom_call.1} parent=31 // pred_check
        %p296 = pneg %p62
      $region38: #{tpu_custom_call.1} parent=31 // pred_check_branch
        %298 = sbr.rel (%p296) target = $region40
      $region39: #{tpu_custom_call.1} parent=31 // pred_region
        %s299 = smul.u32 4, %s16
        %p300 = scmp.lt.s32.totalorder %s299, 15
        %s301 = scalar_select %p300, %s299, 15
        %s302 = smul.addr %s301, 4
        %s303 = scalar_lea.vmem %s1, %s302
        %s304 = smul.u32 4, %s16
      $region40: #{tpu_custom_call.1} parent=31 // pred_fallthru
        _
      // Predicated region
      $region41: #{tpu_custom_call.1} parent=31 // pred_check
        %p305 = pneg %p130
      $region42: #{tpu_custom_call.1} parent=31 // pred_check_branch
        %307 = sbr.rel (%p305) target = $region44
      $region43: #{tpu_custom_call.1} parent=31 // pred_region
        %s308 = smul.u32 2, %s16
        %p309 = scmp.lt.s32.totalorder %s308, 7
        %s310 = scalar_select %p309, %s308, 7
        %s311 = smul.addr %s310, 4
        %s312 = scalar_lea.vmem %s4, %s311
        %s313 = smul.u32 2, %s16
      $region44: #{tpu_custom_call.1} parent=31 // pred_fallthru
        _
    $region32: #{tpu_custom_call.1} parent=5 // pred_fallthru
      _
    %p314 = scmp.le.s32.totalorder 1, %s16
    %p315 = scmp.lt.s32.totalorder %s16, 5
    %p316 = pnand %p314, %p315
    %p317 = pneg %p316
    // Predicated region
    $region45: #{tpu_custom_call.1} parent=5 // pred_check
      _
    $region46: #{tpu_custom_call.1} parent=5 // pred_check_branch
      %319 = sbr.rel (%p316) target = $region48
    $region47: #{tpu_custom_call.1} parent=5 // pred_region
      %s320 = ssub.s32 %s16, 1
      %s321 = smul.u32 8, %s21
      %p322 = scmp.lt.s32.totalorder %s321, 31
      %s323 = scalar_select %p322, %s321, 31
      %s324 = smul.addr %s323, 8
      %s325 = scalar_lea.vmem %s0, %s324
      %p326 = pneg %p42
      %p327 = pneg %p39
      %s328 = smul.u32 4, %s21
      %p329 = scmp.lt.s32.totalorder %s328, 15
      %s330 = scalar_select %p329, %s328, 15
      %s331 = smul.addr %s330, 4
      %s332 = scalar_lea.vmem %s1, %s331
      %p333 = pneg %p68
      %p334 = pneg %p65
      %p335 = pneg %p89
      %p336 = pneg %p86
      %p337 = pneg %p110
      %p338 = pneg %p107
      %s339 = smul.u32 2, %s21
      %p340 = scmp.lt.s32.totalorder %s339, 7
      %s341 = scalar_select %p340, %s339, 7
      %s342 = smul.addr %s341, 4
      %s343 = scalar_lea.vmem %s4, %s342
      %p344 = pneg %p136
      %p345 = pneg %p133
      %p346 = pneg %p157
      %p347 = pneg %p154
      %p348 = pneg %p178
      %p349 = pneg %p175
      %p350 = pneg %p204
      %p351 = pneg %p201
      %s352 = smul.u32 8, %s21
      %p353 = scmp.lt.s32.totalorder %s352, 31
      %s354 = scalar_select %p353, %s352, 31
      %s355 = smul.addr %s354, 8
      %s356 = scalar_lea.vmem %s7, %s355
      %p357 = pneg %p230
      %p358 = pneg %p227
      %s359 = smul.u32 4, %s21
      %p360 = scmp.lt.s32.totalorder %s359, 15
      %s361 = scalar_select %p360, %s359, 15
      %s362 = smul.addr %s361, 8
      %s363 = scalar_lea.vmem %s8, %s362
      %p364 = pneg %p256
      %p365 = pneg %p253
      %s366 = smul.u32 2, %s21
      %p367 = scmp.lt.s32.totalorder %s366, 7
      %s368 = scalar_select %p367, %s366, 7
      %s369 = smul.addr %s368, 8
      %s370 = scalar_lea.vmem %s9, %s369
      %s371 = smul.u32 8, %s21
      %p372 = scmp.lt.s32.totalorder %s371, 31
      %s373 = scalar_select %p372, %s371, 31
      %s374 = smul.addr %s373, 8
      %s375 = scalar_lea.vmem %s0, %s374
      %s376 = smul.u32 8, %s21
      %s377 = smul.u32 4, %s21
      %p378 = scmp.lt.s32.totalorder %s377, 15
      %s379 = scalar_select %p378, %s377, 15
      %s380 = smul.addr %s379, 4
      %s381 = scalar_lea.vmem %s1, %s380
      %s382 = smul.u32 4, %s21
      %s383 = smul.u32 2, %s21
      %p384 = scmp.lt.s32.totalorder %s383, 7
      %s385 = scalar_select %p384, %s383, 7
      %s386 = smul.addr %s385, 4
      %s387 = scalar_lea.vmem %s4, %s386
      %s388 = smul.u32 2, %s21
      %s389 = smul.u32 8, %s21
      %p390 = scmp.lt.s32.totalorder %s389, 31
      %s391 = scalar_select %p390, %s389, 31
      %s392 = smul.addr %s391, 8
      %s393 = scalar_lea.vmem %s7, %s392
      %s394 = smul.u32 8, %s21
      %s395 = smul.u32 4, %s21
      %p396 = scmp.lt.s32.totalorder %s395, 15
      %s397 = scalar_select %p396, %s395, 15
      %s398 = smul.addr %s397, 8
      %s399 = scalar_lea.vmem %s8, %s398
      %s400 = smul.u32 4, %s21
      %s401 = smul.u32 2, %s21
      %p402 = scmp.lt.s32.totalorder %s401, 7
      %s403 = scalar_select %p402, %s401, 7
      %s404 = smul.addr %s403, 8
      %s405 = scalar_lea.vmem %s9, %s404
      %s406 = smul.u32 2, %s21
      %v408 = vld [vmem:[%s375] sm:$0xff]
      %v409 = vld [vmem:[%s375 + $0x8] sm:$0xff]
      %v410 = vld [vmem:[%s375 + $0x10] sm:$0xff]
      %v411 = vld [vmem:[%s375 + $0x18] sm:$0xff]
      %v412 = vld [vmem:[%s375 + $0x20] sm:$0xff]
      %v413 = vld [vmem:[%s375 + $0x28] sm:$0xff]
      %v414 = vld [vmem:[%s375 + $0x30] sm:$0xff]
      %v415 = vld [vmem:[%s375 + $0x38] sm:$0xff]
      %v416 = vld [vmem:[%s2] sm:$0xf]
      %v417 = vld [vmem:[%s2 + $0x4] sm:$0xf]
      %v418 = vld [vmem:[%s2 + $0x8] sm:$0xf]
      %v419 = vld [vmem:[%s2 + $0xc] sm:$0xf]
      %v420 = vld [vmem:[%s3] sm:$0xf]
      %v421 = vld [vmem:[%s3 + $0x4] sm:$0xf]
      %v422 = vld [vmem:[%s381] sm:$0xf]
      %v423 = vld [vmem:[%s381 + $0x4] sm:$0xf]
      %v428 = vunpack.c.l.b16 %v416
      %v429 = vunpack.c.l.b16 %v417
      %v430 = vunpack.c.l.b16 %v418
      %v431 = vunpack.c.l.b16 %v419
      %v432 = vpack.c.b16 %v429, %v428
      %v433 = vpack.c.b16 %v431, %v430
      %v436 = vunpack.c.l.b16 %v422
      %v437 = vunpack.c.l.b16 %v423
      %v438 = vpack.c.b16 %v437, %v436
      %vm440 = vcmask 130048
      %v442 = vsel %vm440, %v432, 0
      %v445 = vsel %vm440, %v433, 0
      %447 = vmatprep.subr.bf16.mxu0 0
      %448 = vmatpush1.bf16.msra.mxu0 %v438
      %449 = vmatprep.subr.bf16.mxu0 0
      %450 = vmatpush1.bf16.msra.mxu0 0
      %451 = vmatprep.subr.bf16.mxu0 0
      %452 = vmatpush1.bf16.msra.mxu0 0
      %453 = vmatprep.subr.bf16.mxu0 0
      %454 = vmatpush1.bf16.msra.mxu0 0
      %455 = vmatprep.subr.bf16.mxu0 0
      %456 = vmatpush1.bf16.msra.mxu0 0
      %457 = vmatprep.subr.bf16.mxu0 0
      %458 = vmatpush1.bf16.msra.mxu0 0
      %459 = vmatprep.subr.bf16.mxu0 0
      %460 = vmatpush1.bf16.msra.mxu0 0
      %461 = vmatprep.subr.bf16.mxu0 0
      %462 = vmatpush1.bf16.msra.mxu0 0
      %463 = vmatprep.subr.bf16.mxu0 0
      %464 = vmatpush1.bf16.msra.mxu0 0
      %465 = vmatprep.subr.bf16.mxu0 0
      %466 = vmatpush1.bf16.msra.mxu0 0
      %467 = vmatprep.subr.bf16.mxu0 0
      %468 = vmatpush1.bf16.msra.mxu0 0
      %469 = vmatprep.subr.bf16.mxu0 0
      %470 = vmatpush1.bf16.msra.mxu0 0
      %471 = vmatprep.subr.bf16.mxu0 0
      %472 = vmatpush1.bf16.msra.mxu0 0
      %473 = vmatprep.subr.bf16.mxu0 0
      %474 = vmatpush1.bf16.msra.mxu0 0
      %475 = vmatprep.subr.bf16.mxu0 0
      %476 = vmatpush1.bf16.msra.mxu0 0
      %477 = vmatprep.subr.bf16.mxu0 0
      %478 = vmatpush1.bf16.msra.mxu0 0
      %479 = vmatprep.mubr.bf16.mxu0 0
      %480 = vmatmul.mubr.bf16.gmra.mrb[0].mxu0 %v442
      %v481 = vpop.f32.mrb[0].mxu0
      %v482 = vadd.f32 0.0, %v481
      %v483 = vpop.f32.mrb[0].mxu0
      %v484 = vpop.f32.mrb[0].mxu0
      %v485 = vadd.f32 0.0, %v484
      %v486 = vpop.f32.mrb[0].mxu0
      %487 = vmatprep.mubr.bf16.mxu0 0
      %488 = vmatmul.mubr.bf16.gmra.mrb[0].mxu0 %v445
      %v489 = vpop.f32.mrb[0].mxu0
      %v490 = vadd.f32 0.0, %v489
      %v491 = vpop.f32.mrb[0].mxu0
      %v492 = vpop.f32.mrb[0].mxu0
      %v493 = vadd.f32 0.0, %v492
      %v494 = vpop.f32.mrb[0].mxu0
      %495 = vdwg.mxu0
      %v496 = vld [vmem:[%s381 + $0x8] sm:$0xf]
      %v497 = vld [vmem:[%s381 + $0xc] sm:$0xf]
      %v500 = vunpack.c.l.b16 %v496
      %v501 = vunpack.c.l.b16 %v497
      %v502 = vpack.c.b16 %v501, %v500
      %504 = vmatprep.subr.bf16.mxu0 0
      %505 = vmatpush1.bf16.msra.mxu0 %v502
      %506 = vmatprep.subr.bf16.mxu0 0
      %507 = vmatpush1.bf16.msra.mxu0 0
      %508 = vmatprep.subr.bf16.mxu0 0
      %509 = vmatpush1.bf16.msra.mxu0 0
      %510 = vmatprep.subr.bf16.mxu0 0
      %511 = vmatpush1.bf16.msra.mxu0 0
      %512 = vmatprep.subr.bf16.mxu0 0
      %513 = vmatpush1.bf16.msra.mxu0 0
      %514 = vmatprep.subr.bf16.mxu0 0
      %515 = vmatpush1.bf16.msra.mxu0 0
      %516 = vmatprep.subr.bf16.mxu0 0
      %517 = vmatpush1.bf16.msra.mxu0 0
      %518 = vmatprep.subr.bf16.mxu0 0
      %519 = vmatpush1.bf16.msra.mxu0 0
      %520 = vmatprep.subr.bf16.mxu0 0
      %521 = vmatpush1.bf16.msra.mxu0 0
      %522 = vmatprep.subr.bf16.mxu0 0
      %523 = vmatpush1.bf16.msra.mxu0 0
      %524 = vmatprep.subr.bf16.mxu0 0
      %525 = vmatpush1.bf16.msra.mxu0 0
      %526 = vmatprep.subr.bf16.mxu0 0
      %527 = vmatpush1.bf16.msra.mxu0 0
      %528 = vmatprep.subr.bf16.mxu0 0
      %529 = vmatpush1.bf16.msra.mxu0 0
      %530 = vmatprep.subr.bf16.mxu0 0
      %531 = vmatpush1.bf16.msra.mxu0 0
      %532 = vmatprep.subr.bf16.mxu0 0
      %533 = vmatpush1.bf16.msra.mxu0 0
      %534 = vmatprep.subr.bf16.mxu0 0
      %535 = vmatpush1.bf16.msra.mxu0 0
      %536 = vmatprep.mubr.bf16.mxu0 0
      %537 = vmatmul.mubr.bf16.gmra.mrb[0].mxu0 %v442
      %v538 = vpop.f32.mrb[0].mxu0
      %v539 = vadd.f32 0.0, %v538
      %v540 = vpop.f32.mrb[0].mxu0
      %v541 = vpop.f32.mrb[0].mxu0
      %v542 = vadd.f32 0.0, %v541
      %v543 = vpop.f32.mrb[0].mxu0
      %544 = vmatprep.mubr.bf16.mxu0 0
      %545 = vmatmul.mubr.bf16.gmra.mrb[0].mxu0 %v445
      %v546 = vpop.f32.mrb[0].mxu0
      %v547 = vadd.f32 0.0, %v546
      %v548 = vpop.f32.mrb[0].mxu0
      %v549 = vpop.f32.mrb[0].mxu0
      %v550 = vadd.f32 0.0, %v549
      %v551 = vpop.f32.mrb[0].mxu0
      %552 = vdwg.mxu0
      %v553 = vpack.c.bf16 %v485, %v482
      %v554 = vpack.c.bf16 %v493, %v490
      %v555 = vpack.c.bf16 %v542, %v539
      %v556 = vpack.c.bf16 %v550, %v547
      %v559 = vunpack.c.l.b16 %v420
      %v560 = vunpack.c.l.b16 %v421
      %v561 = vpack.c.b16 %v560, %v559
      %v564 = vsel %vm440, %v553, 0
      %v567 = vsel %vm440, %v554, 0
      %v570 = vsel %vm440, %v555, 0
      %v573 = vsel %vm440, %v556, 0
      %575 = vmatprep.subr.bf16.mxu0 0
      %576 = vmatpush1.bf16.msra.mxu0 %v561
      %577 = vmatprep.subr.bf16.mxu0 0
      %578 = vmatpush1.bf16.msra.mxu0 0
      %579 = vmatprep.subr.bf16.mxu0 0
      %580 = vmatpush1.bf16.msra.mxu0 0
      %581 = vmatprep.subr.bf16.mxu0 0
      %582 = vmatpush1.bf16.msra.mxu0 0
      %583 = vmatprep.subr.bf16.mxu0 0
      %584 = vmatpush1.bf16.msra.mxu0 0
      %585 = vmatprep.subr.bf16.mxu0 0
      %586 = vmatpush1.bf16.msra.mxu0 0
      %587 = vmatprep.subr.bf16.mxu0 0
      %588 = vmatpush1.bf16.msra.mxu0 0
      %589 = vmatprep.subr.bf16.mxu0 0
      %590 = vmatpush1.bf16.msra.mxu0 0
      %591 = vmatprep.subr.bf16.mxu0 0
      %592 = vmatpush1.bf16.msra.mxu0 0
      %593 = vmatprep.subr.bf16.mxu0 0
      %594 = vmatpush1.bf16.msra.mxu0 0
      %595 = vmatprep.subr.bf16.mxu0 0
      %596 = vmatpush1.bf16.msra.mxu0 0
      %597 = vmatprep.subr.bf16.mxu0 0
      %598 = vmatpush1.bf16.msra.mxu0 0
      %599 = vmatprep.subr.bf16.mxu0 0
      %600 = vmatpush1.bf16.msra.mxu0 0
      %601 = vmatprep.subr.bf16.mxu0 0
      %602 = vmatpush1.bf16.msra.mxu0 0
      %603 = vmatprep.subr.bf16.mxu0 0
      %604 = vmatpush1.bf16.msra.mxu0 0
      %605 = vmatprep.subr.bf16.mxu0 0
      %606 = vmatpush1.bf16.msra.mxu0 0
      %607 = vmatprep.mubr.bf16.mxu0 0
      %608 = vmatmul.mubr.bf16.gmra.mrb[0].mxu0 %v564
      %v609 = vpop.f32.mrb[0].mxu0
      %v610 = vadd.f32 0.0, %v609
      %v611 = vpop.f32.mrb[0].mxu0
      %v612 = vpop.f32.mrb[0].mxu0
      %v613 = vadd.f32 0.0, %v612
      %v614 = vpop.f32.mrb[0].mxu0
      %615 = vmatprep.mubr.bf16.mxu0 0
      %616 = vmatmul.mubr.bf16.gmra.mrb[0].mxu0 %v567
      %v617 = vpop.f32.mrb[0].mxu0
      %v618 = vadd.f32 0.0, %v617
      %v619 = vpop.f32.mrb[0].mxu0
      %v620 = vpop.f32.mrb[0].mxu0
      %v621 = vadd.f32 0.0, %v620
      %v622 = vpop.f32.mrb[0].mxu0
      %623 = vmatprep.mubr.bf16.mxu0 0
      %624 = vmatmul.mubr.bf16.gmra.mrb[0].mxu0 %v570
      %v625 = vpop.f32.mrb[0].mxu0
      %v626 = vadd.f32 0.0, %v625
      %v627 = vpop.f32.mrb[0].mxu0
      %v628 = vpop.f32.mrb[0].mxu0
      %v629 = vadd.f32 0.0, %v628
      %v630 = vpop.f32.mrb[0].mxu0
      %631 = vmatprep.mubr.bf16.mxu0 0
      %632 = vmatmul.mubr.bf16.gmra.mrb[0].mxu0 %v573
      %v633 = vpop.f32.mrb[0].mxu0
      %v634 = vadd.f32 0.0, %v633
      %v635 = vpop.f32.mrb[0].mxu0
      %v636 = vpop.f32.mrb[0].mxu0
      %v637 = vadd.f32 0.0, %v636
      %v638 = vpop.f32.mrb[0].mxu0
      %639 = vdwg.mxu0
      %v640 = vmax.f32 %v408, %v610
      %v641 = vmax.f32 %v409, %v613
      %v642 = vmax.f32 %v410, %v618
      %v643 = vmax.f32 %v411, %v621
      %v644 = vmax.f32 %v412, %v626
      %v645 = vmax.f32 %v413, %v629
      %v646 = vmax.f32 %v414, %v634
      %v647 = vmax.f32 %v415, %v637
      %v648 = vld [vmem:[%s5] sm:$0xf]
      %v649 = vld [vmem:[%s5 + $0x4] sm:$0xf]
      %v650 = vld [vmem:[%s5 + $0x8] sm:$0xf]
      %v651 = vld [vmem:[%s5 + $0xc] sm:$0xf]
      %v652 = vld [vmem:[%s6] sm:$0xf]
      %v653 = vld [vmem:[%s387] sm:$0xf]
      %v658 = vunpack.c.l.b16 %v648
      %v659 = vunpack.c.l.b16 %v649
      %v660 = vunpack.c.l.b16 %v650
      %v661 = vunpack.c.l.b16 %v651
      %v662 = vpack.c.b16 %v659, %v658
      %v663 = vpack.c.b16 %v661, %v660
      %vm664 = vcmask 64512
      %v666 = vsel %vm664, %v662, 0
      %v669 = vsel %vm664, %v663, 0
      %vm671 = vcmask 1043456
      %v673 = vsel %vm671, %v653, 0
      %675 = vmatprep.subr.bf16.mxu0 0
      %676 = vmatpush1.bf16.msra.mxu0 %v673
      %677 = vmatprep.subr.bf16.mxu0 0
      %678 = vmatpush1.bf16.msra.mxu0 0
      %679 = vmatprep.subr.bf16.mxu0 0
      %680 = vmatpush1.bf16.msra.mxu0 0
      %681 = vmatprep.subr.bf16.mxu0 0
      %682 = vmatpush1.bf16.msra.mxu0 0
      %683 = vmatprep.subr.bf16.mxu0 0
      %684 = vmatpush1.bf16.msra.mxu0 0
      %685 = vmatprep.subr.bf16.mxu0 0
      %686 = vmatpush1.bf16.msra.mxu0 0
      %687 = vmatprep.subr.bf16.mxu0 0
      %688 = vmatpush1.bf16.msra.mxu0 0
      %689 = vmatprep.subr.bf16.mxu0 0
      %690 = vmatpush1.bf16.msra.mxu0 0
      %691 = vmatprep.subr.bf16.mxu0 0
      %692 = vmatpush1.bf16.msra.mxu0 0
      %693 = vmatprep.subr.bf16.mxu0 0
      %694 = vmatpush1.bf16.msra.mxu0 0
      %695 = vmatprep.subr.bf16.mxu0 0
      %696 = vmatpush1.bf16.msra.mxu0 0
      %697 = vmatprep.subr.bf16.mxu0 0
      %698 = vmatpush1.bf16.msra.mxu0 0
      %699 = vmatprep.subr.bf16.mxu0 0
      %700 = vmatpush1.bf16.msra.mxu0 0
      %701 = vmatprep.subr.bf16.mxu0 0
      %702 = vmatpush1.bf16.msra.mxu0 0
      %703 = vmatprep.subr.bf16.mxu0 0
      %704 = vmatpush1.bf16.msra.mxu0 0
      %705 = vmatprep.subr.bf16.mxu0 0
      %706 = vmatpush1.bf16.msra.mxu0 0
      %707 = vmatprep.mubr.bf16.mxu0 0
      %708 = vmatmul.mubr.bf16.gmra.mrb[0].mxu0 %v666
      %v709 = vpop.f32.mrb[0].mxu0
      %v710 = vadd.f32 0.0, %v709
      %v711 = vpop.f32.mrb[0].mxu0
      %v712 = vpop.f32.mrb[0].mxu0
      %v713 = vadd.f32 0.0, %v712
      %v714 = vpop.f32.mrb[0].mxu0
      %715 = vmatprep.mubr.bf16.mxu0 0
      %716 = vmatmul.mubr.bf16.gmra.mrb[0].mxu0 %v669
      %v717 = vpop.f32.mrb[0].mxu0
      %v718 = vadd.f32 0.0, %v717
      %v719 = vpop.f32.mrb[0].mxu0
      %v720 = vpop.f32.mrb[0].mxu0
      %v721 = vadd.f32 0.0, %v720
      %v722 = vpop.f32.mrb[0].mxu0
      %723 = vdwg.mxu0
      %v724 = vld [vmem:[%s387 + $0x4] sm:$0xf]
      %v726 = vsel %vm671, %v724, 0
      %728 = vmatprep.subr.bf16.mxu0 0
      %729 = vmatpush1.bf16.msra.mxu0 %v726
      %730 = vmatprep.subr.bf16.mxu0 0
      %731 = vmatpush1.bf16.msra.mxu0 0
      %732 = vmatprep.subr.bf16.mxu0 0
      %733 = vmatpush1.bf16.msra.mxu0 0
      %734 = vmatprep.subr.bf16.mxu0 0
      %735 = vmatpush1.bf16.msra.mxu0 0
      %736 = vmatprep.subr.bf16.mxu0 0
      %737 = vmatpush1.bf16.msra.mxu0 0
      %738 = vmatprep.subr.bf16.mxu0 0
      %739 = vmatpush1.bf16.msra.mxu0 0
      %740 = vmatprep.subr.bf16.mxu0 0
      %741 = vmatpush1.bf16.msra.mxu0 0
      %742 = vmatprep.subr.bf16.mxu0 0
      %743 = vmatpush1.bf16.msra.mxu0 0
      %744 = vmatprep.subr.bf16.mxu0 0
      %745 = vmatpush1.bf16.msra.mxu0 0
      %746 = vmatprep.subr.bf16.mxu0 0
      %747 = vmatpush1.bf16.msra.mxu0 0
      %748 = vmatprep.subr.bf16.mxu0 0
      %749 = vmatpush1.bf16.msra.mxu0 0
      %750 = vmatprep.subr.bf16.mxu0 0
      %751 = vmatpush1.bf16.msra.mxu0 0
      %752 = vmatprep.subr.bf16.mxu0 0
      %753 = vmatpush1.bf16.msra.mxu0 0
      %754 = vmatprep.subr.bf16.mxu0 0
      %755 = vmatpush1.bf16.msra.mxu0 0
      %756 = vmatprep.subr.bf16.mxu0 0
      %757 = vmatpush1.bf16.msra.mxu0 0
      %758 = vmatprep.subr.bf16.mxu0 0
      %759 = vmatpush1.bf16.msra.mxu0 0
      %760 = vmatprep.mubr.bf16.mxu0 0
      %761 = vmatmul.mubr.bf16.gmra.mrb[0].mxu0 %v666
      %v762 = vpop.f32.mrb[0].mxu0
      %v763 = vadd.f32 0.0, %v762
      %v764 = vpop.f32.mrb[0].mxu0
      %v765 = vpop.f32.mrb[0].mxu0
      %v766 = vadd.f32 0.0, %v765
      %v767 = vpop.f32.mrb[0].mxu0
      %768 = vmatprep.mubr.bf16.mxu0 0
      %769 = vmatmul.mubr.bf16.gmra.mrb[0].mxu0 %v669
      %v770 = vpop.f32.mrb[0].mxu0
      %v771 = vadd.f32 0.0, %v770
      %v772 = vpop.f32.mrb[0].mxu0
      %v773 = vpop.f32.mrb[0].mxu0
      %v774 = vadd.f32 0.0, %v773
      %v775 = vpop.f32.mrb[0].mxu0
      %776 = vdwg.mxu0
      %v777 = vpack.c.bf16 %v713, %v710
      %v778 = vpack.c.bf16 %v721, %v718
      %v779 = vpack.c.bf16 %v766, %v763
      %v780 = vpack.c.bf16 %v774, %v771
      %v782 = vsel %vm664, %v777, 0
      %v785 = vsel %vm664, %v778, 0
      %v788 = vsel %vm664, %v779, 0
      %v791 = vsel %vm664, %v780, 0
      %v794 = vsel %vm671, %v652, 0
      %796 = vmatprep.subr.bf16.mxu0 0
      %797 = vmatpush1.bf16.msra.mxu0 %v794
      %798 = vmatprep.subr.bf16.mxu0 0
      %799 = vmatpush1.bf16.msra.mxu0 0
      %800 = vmatprep.subr.bf16.mxu0 0
      %801 = vmatpush1.bf16.msra.mxu0 0
      %802 = vmatprep.subr.bf16.mxu0 0
      %803 = vmatpush1.bf16.msra.mxu0 0
      %804 = vmatprep.subr.bf16.mxu0 0
      %805 = vmatpush1.bf16.msra.mxu0 0
      %806 = vmatprep.subr.bf16.mxu0 0
      %807 = vmatpush1.bf16.msra.mxu0 0
      %808 = vmatprep.subr.bf16.mxu0 0
      %809 = vmatpush1.bf16.msra.mxu0 0
      %810 = vmatprep.subr.bf16.mxu0 0
      %811 = vmatpush1.bf16.msra.mxu0 0
      %812 = vmatprep.subr.bf16.mxu0 0
      %813 = vmatpush1.bf16.msra.mxu0 0
      %814 = vmatprep.subr.bf16.mxu0 0
      %815 = vmatpush1.bf16.msra.mxu0 0
      %816 = vmatprep.subr.bf16.mxu0 0
      %817 = vmatpush1.bf16.msra.mxu0 0
      %818 = vmatprep.subr.bf16.mxu0 0
      %819 = vmatpush1.bf16.msra.mxu0 0
      %820 = vmatprep.subr.bf16.mxu0 0
      %821 = vmatpush1.bf16.msra.mxu0 0
      %822 = vmatprep.subr.bf16.mxu0 0
      %823 = vmatpush1.bf16.msra.mxu0 0
      %824 = vmatprep.subr.bf16.mxu0 0
      %825 = vmatpush1.bf16.msra.mxu0 0
      %826 = vmatprep.subr.bf16.mxu0 0
      %827 = vmatpush1.bf16.msra.mxu0 0
      %828 = vmatprep.mubr.bf16.mxu0 0
      %829 = vmatmul.mubr.bf16.gmra.mrb[0].mxu0 %v782
      %v830 = vpop.f32.mrb[0].mxu0
      %v831 = vadd.f32 0.0, %v830
      %v832 = vpop.f32.mrb[0].mxu0
      %v833 = vpop.f32.mrb[0].mxu0
      %v834 = vadd.f32 0.0, %v833
      %v835 = vpop.f32.mrb[0].mxu0
      %836 = vmatprep.mubr.bf16.mxu0 0
      %837 = vmatmul.mubr.bf16.gmra.mrb[0].mxu0 %v785
      %v838 = vpop.f32.mrb[0].mxu0
      %v839 = vadd.f32 0.0, %v838
      %v840 = vpop.f32.mrb[0].mxu0
      %v841 = vpop.f32.mrb[0].mxu0
      %v842 = vadd.f32 0.0, %v841
      %v843 = vpop.f32.mrb[0].mxu0
      %844 = vmatprep.mubr.bf16.mxu0 0
      %845 = vmatmul.mubr.bf16.gmra.mrb[0].mxu0 %v788
      %v846 = vpop.f32.mrb[0].mxu0
      %v847 = vadd.f32 0.0, %v846
      %v848 = vpop.f32.mrb[0].mxu0
      %v849 = vpop.f32.mrb[0].mxu0
      %v850 = vadd.f32 0.0, %v849
      %v851 = vpop.f32.mrb[0].mxu0
      %852 = vmatprep.mubr.bf16.mxu0 0
      %853 = vmatmul.mubr.bf16.gmra.mrb[0].mxu0 %v791
      %v854 = vpop.f32.mrb[0].mxu0
      %v855 = vadd.f32 0.0, %v854
      %v856 = vpop.f32.mrb[0].mxu0
      %v857 = vpop.f32.mrb[0].mxu0
      %v858 = vadd.f32 0.0, %v857
      %v859 = vpop.f32.mrb[0].mxu0
      %860 = vdwg.mxu0
      %v861 = vmax.f32 %v640, %v831
      %v862 = vmax.f32 %v641, %v834
      %v863 = vmax.f32 %v642, %v839
      %v864 = vmax.f32 %v643, %v842
      %v865 = vmax.f32 %v644, %v847
      %v866 = vmax.f32 %v645, %v850
      %v867 = vmax.f32 %v646, %v855
      %v868 = vmax.f32 %v647, %v858
      %vm869 = vcmask 261120
      %870 = vst.msk [vmem:[%s393] sm:$0xff] %vm869, %v861
      %871 = vst.msk [vmem:[%s393 + $0x8] sm:$0xff] %vm869, %v862
      %872 = vst.msk [vmem:[%s393 + $0x10] sm:$0xff] %vm869, %v863
      %873 = vst.msk [vmem:[%s393 + $0x18] sm:$0xff] %vm869, %v864
      %874 = vst.msk [vmem:[%s393 + $0x20] sm:$0xff] %vm869, %v865
      %875 = vst.msk [vmem:[%s393 + $0x28] sm:$0xff] %vm869, %v866
      %876 = vst.msk [vmem:[%s393 + $0x30] sm:$0xff] %vm869, %v867
      %877 = vst.msk [vmem:[%s393 + $0x38] sm:$0xff] %vm869, %v868
      %886 = vrot.lane.b32.xlu0 %v861, 127
      %v887 = vpop.permute.xlu0 %886
      %888 = vrot.lane.b32.xlu0 %v862, 127
      %v889 = vpop.permute.xlu0 %888
      %890 = vrot.lane.b32.xlu0 %v863, 127
      %v891 = vpop.permute.xlu0 %890
      %892 = vrot.lane.b32.xlu0 %v864, 127
      %v893 = vpop.permute.xlu0 %892
      %894 = vrot.lane.b32.xlu0 %v865, 127
      %v895 = vpop.permute.xlu0 %894
      %896 = vrot.lane.b32.xlu0 %v866, 127
      %v897 = vpop.permute.xlu0 %896
      %898 = vrot.lane.b32.xlu0 %v867, 127
      %v899 = vpop.permute.xlu0 %898
      %900 = vrot.lane.b32.xlu0 %v868, 127
      %v901 = vpop.permute.xlu0 %900
      %v910 = vmax.f32 %v861, %v887
      %v911 = vmax.f32 %v862, %v889
      %v912 = vmax.f32 %v863, %v891
      %v913 = vmax.f32 %v864, %v893
      %v914 = vmax.f32 %v865, %v895
      %v915 = vmax.f32 %v866, %v897
      %v916 = vmax.f32 %v867, %v899
      %v917 = vmax.f32 %v868, %v901
      %v918 = vlaneseq
      %v919 = vshrl.u32 %v918, 7
      %v920 = vadd.s32 %v919, 8
      %v921 = vadd.s32 %v919, 16
      %v922 = vadd.s32 %v919, 24
      %v923 = vlaneseq
      %v924 = vand.u32 %v923, 127
      %v925 = vmul.u32 %v924, 2
      %vm926 = vcmp.eq.s32.totalorder %v919, %v925
      %vm927 = vcmp.eq.s32.totalorder %v920, %v925
      %vm928 = vcmp.eq.s32.totalorder %v921, %v925
      %vm929 = vcmp.eq.s32.totalorder %v922, %v925
      %v930 = vsel %vm926, 1.0, 0.0
      %v931 = vsel %vm927, 1.0, 0.0
      %v932 = vsel %vm928, 1.0, 0.0
      %v933 = vsel %vm929, 1.0, 0.0
      %vm934 = vcmask 252928
      %v936 = vsel %vm934, %v910, 0
      %v939 = vsel %vm934, %v911, 0
      %v942 = vsel %vm934, %v912, 0
      %v945 = vsel %vm934, %v913, 0
      %v948 = vsel %vm934, %v914, 0
      %v951 = vsel %vm934, %v915, 0
      %v954 = vsel %vm934, %v916, 0
      %v957 = vsel %vm934, %v917, 0
      %vm959 = vcmask 1046528
      %v961 = vsel %vm959, %v933, 0
      %963 = vmatprep.subr.mxu0 0.0
      %964 = vmatpush1.msra.mxu0 %v930
      %965 = vmatprep.subr.mxu0 0.0
      %966 = vmatpush1.msra.mxu0 %v931
      %967 = vmatprep.subr.mxu0 0.0
      %968 = vmatpush1.msra.mxu0 %v932
      %969 = vmatprep.subr.mxu0 0.0
      %970 = vmatpush1.msra.mxu0 %v961
      %971 = vmatprep.subr.mxu0 0.0
      %972 = vmatpush1.msra.mxu0 0.0
      %973 = vmatprep.subr.mxu0 0.0
      %974 = vmatpush1.msra.mxu0 0.0
      %975 = vmatprep.subr.mxu0 0.0
      %976 = vmatpush1.msra.mxu0 0.0
      %977 = vmatprep.subr.mxu0 0.0
      %978 = vmatpush1.msra.mxu0 0.0
      %979 = vmatprep.subr.mxu0 0.0
      %980 = vmatpush1.msra.mxu0 0.0
      %981 = vmatprep.subr.mxu0 0.0
      %982 = vmatpush1.msra.mxu0 0.0
      %983 = vmatprep.subr.mxu0 0.0
      %984 = vmatpush1.msra.mxu0 0.0
      %985 = vmatprep.subr.mxu0 0.0
      %986 = vmatpush1.msra.mxu0 0.0
      %987 = vmatprep.subr.mxu0 0.0
      %988 = vmatpush1.msra.mxu0 0.0
      %989 = vmatprep.subr.mxu0 0.0
      %990 = vmatpush1.msra.mxu0 0.0
      %991 = vmatprep.subr.mxu0 0.0
      %992 = vmatpush1.msra.mxu0 0.0
      %993 = vmatprep.subr.mxu0 0.0
      %994 = vmatpush1.msra.mxu0 0.0
      %995 = vmatprep.subr.mxu0 0.0
      %996 = vmatpush1.msra.mxu0 0.0
      %997 = vmatprep.subr.mxu0 0.0
      %998 = vmatpush1.msra.mxu0 0.0
      %999 = vmatprep.subr.mxu0 0.0
      %1000 = vmatpush1.msra.mxu0 0.0
      %1001 = vmatprep.subr.mxu0 0.0
      %1002 = vmatpush1.msra.mxu0 0.0
      %1003 = vmatprep.subr.mxu0 0.0
      %1004 = vmatpush1.msra.mxu0 0.0
      %1005 = vmatprep.subr.mxu0 0.0
      %1006 = vmatpush1.msra.mxu0 0.0
      %1007 = vmatprep.subr.mxu0 0.0
      %1008 = vmatpush1.msra.mxu0 0.0
      %1009 = vmatprep.subr.mxu0 0.0
      %1010 = vmatpush1.msra.mxu0 0.0
      %1011 = vmatprep.subr.mxu0 0.0
      %1012 = vmatpush1.msra.mxu0 0.0
      %1013 = vmatprep.subr.mxu0 0.0
      %1014 = vmatpush1.msra.mxu0 0.0
      %1015 = vmatprep.subr.mxu0 0.0
      %1016 = vmatpush1.msra.mxu0 0.0
      %1017 = vmatprep.subr.mxu0 0.0
      %1018 = vmatpush1.msra.mxu0 0.0
      %1019 = vmatprep.subr.mxu0 0.0
      %1020 = vmatpush1.msra.mxu0 0.0
      %1021 = vmatprep.subr.mxu0 0.0
      %1022 = vmatpush1.msra.mxu0 0.0
      %1023 = vmatprep.subr.mxu0 0.0
      %1024 = vmatpush1.msra.mxu0 0.0
      %1025 = vmatprep.subr.mxu0 0.0
      %1026 = vmatpush1.msra.mxu0 0.0
      %1027 = vmatprep.mubr.f32.mxu0 0.0
      %1028 = vmatmul.mubr.f32.gmra.mrb[0].mxu0 %v936
      %v1029 = vpop.f32.mrb[0].mxu0
      %v1030 = vadd.f32 0.0, %v1029
      %v1031 = vpop.f32.mrb[0].mxu0
      %1032 = vmatprep.mubr.f32.mxu0 0.0
      %1033 = vmatmul.mubr.f32.gmra.mrb[0].mxu0 %v939
      %v1034 = vpop.f32.mrb[0].mxu0
      %v1035 = vadd.f32 0.0, %v1034
      %v1036 = vpop.f32.mrb[0].mxu0
      %1037 = vmatprep.mubr.f32.mxu0 0.0
      %1038 = vmatmul.mubr.f32.gmra.mrb[0].mxu0 %v942
      %v1039 = vpop.f32.mrb[0].mxu0
      %v1040 = vadd.f32 0.0, %v1039
      %v1041 = vpop.f32.mrb[0].mxu0
      %1042 = vmatprep.mubr.f32.mxu0 0.0
      %1043 = vmatmul.mubr.f32.gmra.mrb[0].mxu0 %v945
      %v1044 = vpop.f32.mrb[0].mxu0
      %v1045 = vadd.f32 0.0, %v1044
      %v1046 = vpop.f32.mrb[0].mxu0
      %1047 = vmatprep.mubr.f32.mxu0 0.0
      %1048 = vmatmul.mubr.f32.gmra.mrb[0].mxu0 %v948
      %v1049 = vpop.f32.mrb[0].mxu0
      %v1050 = vadd.f32 0.0, %v1049
      %v1051 = vpop.f32.mrb[0].mxu0
      %1052 = vmatprep.mubr.f32.mxu0 0.0
      %1053 = vmatmul.mubr.f32.gmra.mrb[0].mxu0 %v951
      %v1054 = vpop.f32.mrb[0].mxu0
      %v1055 = vadd.f32 0.0, %v1054
      %v1056 = vpop.f32.mrb[0].mxu0
      %1057 = vmatprep.mubr.f32.mxu0 0.0
      %1058 = vmatmul.mubr.f32.gmra.mrb[0].mxu0 %v954
      %v1059 = vpop.f32.mrb[0].mxu0
      %v1060 = vadd.f32 0.0, %v1059
      %v1061 = vpop.f32.mrb[0].mxu0
      %1062 = vmatprep.mubr.f32.mxu0 0.0
      %1063 = vmatmul.mubr.f32.gmra.mrb[0].mxu0 %v957
      %v1064 = vpop.f32.mrb[0].mxu0
      %v1065 = vadd.f32 0.0, %v1064
      %v1066 = vpop.f32.mrb[0].mxu0
      %1067 = vdwg.mxu0
      %v1076 = vrot.slane %v1030, 1
      %v1077 = vrot.slane %v1035, 1
      %v1078 = vsel %vm959, %v1076, %v1077
      %v1079 = vrot.slane %v1040, 1
      %v1080 = vsel %vm959, %v1077, %v1079
      %v1081 = vrot.slane %v1045, 1
      %v1082 = vsel %vm959, %v1079, %v1081
      %v1083 = vrot.slane %v1050, 1
      %v1084 = vsel %vm959, %v1081, %v1083
      %v1085 = vrot.slane %v1055, 1
      %v1086 = vsel %vm959, %v1083, %v1085
      %v1087 = vrot.slane %v1060, 1
      %v1088 = vsel %vm959, %v1085, %v1087
      %v1089 = vrot.slane %v1065, 1
      %v1090 = vsel %vm959, %v1087, %v1089
      %v1099 = vmax.f32 %v1030, %v1078
      %v1100 = vmax.f32 %v1035, %v1080
      %v1101 = vmax.f32 %v1040, %v1082
      %v1102 = vmax.f32 %v1045, %v1084
      %v1103 = vmax.f32 %v1050, %v1086
      %v1104 = vmax.f32 %v1055, %v1088
      %v1105 = vmax.f32 %v1060, %v1090
      %v1106 = vmax.f32 %v1065, %v1089
      %v1107 = vmul.u32 %v919, 2
      %v1108 = vmul.u32 %v920, 2
      %vm1109 = vcmp.eq.s32.totalorder %v924, %v1107
      %vm1110 = vcmp.eq.s32.totalorder %v924, %v1108
      %v1111 = vsel %vm1109, 1.0, 0.0
      %v1112 = vsel %vm1110, 1.0, 0.0
      %v1114 = vsel %vm934, %v1111, 0
      %v1117 = vsel %vm934, %v1112, 0
      %v1120 = vsel %vm959, %v1102, 0
      %1122 = vmatprep.subr.mxu0 0.0
      %1123 = vmatpush1.msra.mxu0 %v1099
      %1124 = vmatprep.subr.mxu0 0.0
      %1125 = vmatpush1.msra.mxu0 %v1100
      %1126 = vmatprep.subr.mxu0 0.0
      %1127 = vmatpush1.msra.mxu0 %v1101
      %1128 = vmatprep.subr.mxu0 0.0
      %1129 = vmatpush1.msra.mxu0 %v1120
      %1130 = vmatprep.subr.mxu0 0.0
      %1131 = vmatpush1.msra.mxu0 0.0
      %1132 = vmatprep.subr.mxu0 0.0
      %1133 = vmatpush1.msra.mxu0 0.0
      %1134 = vmatprep.subr.mxu0 0.0
      %1135 = vmatpush1.msra.mxu0 0.0
      %1136 = vmatprep.subr.mxu0 0.0
      %1137 = vmatpush1.msra.mxu0 0.0
      %1138 = vmatprep.subr.mxu0 0.0
      %1139 = vmatpush1.msra.mxu0 0.0
      %1140 = vmatprep.subr.mxu0 0.0
      %1141 = vmatpush1.msra.mxu0 0.0
      %1142 = vmatprep.subr.mxu0 0.0
      %1143 = vmatpush1.msra.mxu0 0.0
      %1144 = vmatprep.subr.mxu0 0.0
      %1145 = vmatpush1.msra.mxu0 0.0
      %1146 = vmatprep.subr.mxu0 0.0
      %1147 = vmatpush1.msra.mxu0 0.0
      %1148 = vmatprep.subr.mxu0 0.0
      %1149 = vmatpush1.msra.mxu0 0.0
      %1150 = vmatprep.subr.mxu0 0.0
      %1151 = vmatpush1.msra.mxu0 0.0
      %1152 = vmatprep.subr.mxu0 0.0
      %1153 = vmatpush1.msra.mxu0 0.0
      %1154 = vmatprep.subr.mxu0 0.0
      %1155 = vmatpush1.msra.mxu0 0.0
      %1156 = vmatprep.subr.mxu0 0.0
      %1157 = vmatpush1.msra.mxu0 0.0
      %1158 = vmatprep.subr.mxu0 0.0
      %1159 = vmatpush1.msra.mxu0 0.0
      %1160 = vmatprep.subr.mxu0 0.0
      %1161 = vmatpush1.msra.mxu0 0.0
      %1162 = vmatprep.subr.mxu0 0.0
      %1163 = vmatpush1.msra.mxu0 0.0
      %1164 = vmatprep.subr.mxu0 0.0
      %1165 = vmatpush1.msra.mxu0 0.0
      %1166 = vmatprep.subr.mxu0 0.0
      %1167 = vmatpush1.msra.mxu0 0.0
      %1168 = vmatprep.subr.mxu0 0.0
      %1169 = vmatpush1.msra.mxu0 0.0
      %1170 = vmatprep.subr.mxu0 0.0
      %1171 = vmatpush1.msra.mxu0 0.0
      %1172 = vmatprep.subr.mxu0 0.0
      %1173 = vmatpush1.msra.mxu0 0.0
      %1174 = vmatprep.subr.mxu0 0.0
      %1175 = vmatpush1.msra.mxu0 0.0
      %1176 = vmatprep.subr.mxu0 0.0
      %1177 = vmatpush1.msra.mxu0 0.0
      %1178 = vmatprep.subr.mxu0 0.0
      %1179 = vmatpush1.msra.mxu0 0.0
      %1180 = vmatprep.subr.mxu0 0.0
      %1181 = vmatpush1.msra.mxu0 0.0
      %1182 = vmatprep.subr.mxu0 0.0
      %1183 = vmatpush1.msra.mxu0 0.0
      %1184 = vmatprep.subr.mxu0 0.0
      %1185 = vmatpush1.msra.mxu0 0.0
      %1186 = vmatprep.mubr.f32.mxu0 0.0
      %1187 = vmatmul.mubr.f32.gmra.mrb[0].mxu0 %v1114
      %v1188 = vpop.f32.mrb[0].mxu0
      %v1189 = vadd.f32 0.0, %v1188
      %v1190 = vpop.f32.mrb[0].mxu0
      %1191 = vmatprep.mubr.f32.mxu0 0.0
      %1192 = vmatmul.mubr.f32.gmra.mrb[0].mxu0 %v1117
      %v1193 = vpop.f32.mrb[0].mxu0
      %v1194 = vadd.f32 0.0, %v1193
      %v1195 = vpop.f32.mrb[0].mxu0
      %1196 = vdwg.mxu0
      %v1198 = vsel %vm959, %v1106, 0
      %1200 = vmatprep.subr.mxu0 0.0
      %1201 = vmatpush1.msra.mxu0 %v1103
      %1202 = vmatprep.subr.mxu0 0.0
      %1203 = vmatpush1.msra.mxu0 %v1104
      %1204 = vmatprep.subr.mxu0 0.0
      %1205 = vmatpush1.msra.mxu0 %v1105
      %1206 = vmatprep.subr.mxu0 0.0
      %1207 = vmatpush1.msra.mxu0 %v1198
      %1208 = vmatprep.subr.mxu0 0.0
      %1209 = vmatpush1.msra.mxu0 0.0
      %1210 = vmatprep.subr.mxu0 0.0
      %1211 = vmatpush1.msra.mxu0 0.0
      %1212 = vmatprep.subr.mxu0 0.0
      %1213 = vmatpush1.msra.mxu0 0.0
      %1214 = vmatprep.subr.mxu0 0.0
      %1215 = vmatpush1.msra.mxu0 0.0
      %1216 = vmatprep.subr.mxu0 0.0
      %1217 = vmatpush1.msra.mxu0 0.0
      %1218 = vmatprep.subr.mxu0 0.0
      %1219 = vmatpush1.msra.mxu0 0.0
      %1220 = vmatprep.subr.mxu0 0.0
      %1221 = vmatpush1.msra.mxu0 0.0
      %1222 = vmatprep.subr.mxu0 0.0
      %1223 = vmatpush1.msra.mxu0 0.0
      %1224 = vmatprep.subr.mxu0 0.0
      %1225 = vmatpush1.msra.mxu0 0.0
      %1226 = vmatprep.subr.mxu0 0.0
      %1227 = vmatpush1.msra.mxu0 0.0
      %1228 = vmatprep.subr.mxu0 0.0
      %1229 = vmatpush1.msra.mxu0 0.0
      %1230 = vmatprep.subr.mxu0 0.0
      %1231 = vmatpush1.msra.mxu0 0.0
      %1232 = vmatprep.subr.mxu0 0.0
      %1233 = vmatpush1.msra.mxu0 0.0
      %1234 = vmatprep.subr.mxu0 0.0
      %1235 = vmatpush1.msra.mxu0 0.0
      %1236 = vmatprep.subr.mxu0 0.0
      %1237 = vmatpush1.msra.mxu0 0.0
      %1238 = vmatprep.subr.mxu0 0.0
      %1239 = vmatpush1.msra.mxu0 0.0
      %1240 = vmatprep.subr.mxu0 0.0
      %1241 = vmatpush1.msra.mxu0 0.0
      %1242 = vmatprep.subr.mxu0 0.0
      %1243 = vmatpush1.msra.mxu0 0.0
      %1244 = vmatprep.subr.mxu0 0.0
      %1245 = vmatpush1.msra.mxu0 0.0
      %1246 = vmatprep.subr.mxu0 0.0
      %1247 = vmatpush1.msra.mxu0 0.0
      %1248 = vmatprep.subr.mxu0 0.0
      %1249 = vmatpush1.msra.mxu0 0.0
      %1250 = vmatprep.subr.mxu0 0.0
      %1251 = vmatpush1.msra.mxu0 0.0
      %1252 = vmatprep.subr.mxu0 0.0
      %1253 = vmatpush1.msra.mxu0 0.0
      %1254 = vmatprep.subr.mxu0 0.0
      %1255 = vmatpush1.msra.mxu0 0.0
      %1256 = vmatprep.subr.mxu0 0.0
      %1257 = vmatpush1.msra.mxu0 0.0
      %1258 = vmatprep.subr.mxu0 0.0
      %1259 = vmatpush1.msra.mxu0 0.0
      %1260 = vmatprep.subr.mxu0 0.0
      %1261 = vmatpush1.msra.mxu0 0.0
      %1262 = vmatprep.subr.mxu0 0.0
      %1263 = vmatpush1.msra.mxu0 0.0
      %1264 = vmatprep.mubr.f32.mxu0 0.0
      %1265 = vmatmul.mubr.f32.gmra.mrb[0].mxu0 %v1114
      %v1266 = vpop.f32.mrb[0].mxu0
      %v1267 = vadd.f32 0.0, %v1266
      %v1268 = vpop.f32.mrb[0].mxu0
      %1269 = vmatprep.mubr.f32.mxu0 0.0
      %1270 = vmatmul.mubr.f32.gmra.mrb[0].mxu0 %v1117
      %v1271 = vpop.f32.mrb[0].mxu0
      %v1272 = vadd.f32 0.0, %v1271
      %v1273 = vpop.f32.mrb[0].mxu0
      %1274 = vdwg.mxu0
      %1275 = vst.msk [vmem:[%s399] sm:$0xff] %vm440, %v1189
      %1276 = vst.msk [vmem:[%s399 + $0x8] sm:$0xff] %vm440, %v1194
      %1277 = vst.msk [vmem:[%s399 + $0x10] sm:$0xff] %vm440, %v1267
      %1278 = vst.msk [vmem:[%s399 + $0x18] sm:$0xff] %vm440, %v1272
      %1283 = vrot.lane.b32.xlu0 %v1189, 127
      %v1284 = vpop.permute.xlu0 %1283
      %1285 = vrot.lane.b32.xlu0 %v1194, 127
      %v1286 = vpop.permute.xlu0 %1285
      %1287 = vrot.lane.b32.xlu0 %v1267, 127
      %v1288 = vpop.permute.xlu0 %1287
      %1289 = vrot.lane.b32.xlu0 %v1272, 127
      %v1290 = vpop.permute.xlu0 %1289
      %v1295 = vmax.f32 %v1189, %v1284
      %v1296 = vmax.f32 %v1194, %v1286
      %v1297 = vmax.f32 %v1267, %v1288
      %v1298 = vmax.f32 %v1272, %v1290
      %vm1299 = vcmask 121856
      %v1301 = vsel %vm1299, %v1295, 0
      %v1304 = vsel %vm1299, %v1296, 0
      %v1307 = vsel %vm1299, %v1297, 0
      %v1310 = vsel %vm1299, %v1298, 0
      %v1313 = vsel %vm959, %v931, 0
      %1315 = vmatprep.subr.mxu0 0.0
      %1316 = vmatpush1.msra.mxu0 %v930
      %1317 = vmatprep.subr.mxu0 0.0
      %1318 = vmatpush1.msra.mxu0 %v1313
      %1319 = vmatprep.subr.mxu0 0.0
      %1320 = vmatpush1.msra.mxu0 0.0
      %1321 = vmatprep.subr.mxu0 0.0
      %1322 = vmatpush1.msra.mxu0 0.0
      %1323 = vmatprep.subr.mxu0 0.0
      %1324 = vmatpush1.msra.mxu0 0.0
      %1325 = vmatprep.subr.mxu0 0.0
      %1326 = vmatpush1.msra.mxu0 0.0
      %1327 = vmatprep.subr.mxu0 0.0
      %1328 = vmatpush1.msra.mxu0 0.0
      %1329 = vmatprep.subr.mxu0 0.0
      %1330 = vmatpush1.msra.mxu0 0.0
      %1331 = vmatprep.subr.mxu0 0.0
      %1332 = vmatpush1.msra.mxu0 0.0
      %1333 = vmatprep.subr.mxu0 0.0
      %1334 = vmatpush1.msra.mxu0 0.0
      %1335 = vmatprep.subr.mxu0 0.0
      %1336 = vmatpush1.msra.mxu0 0.0
      %1337 = vmatprep.subr.mxu0 0.0
      %1338 = vmatpush1.msra.mxu0 0.0
      %1339 = vmatprep.subr.mxu0 0.0
      %1340 = vmatpush1.msra.mxu0 0.0
      %1341 = vmatprep.subr.mxu0 0.0
      %1342 = vmatpush1.msra.mxu0 0.0
      %1343 = vmatprep.subr.mxu0 0.0
      %1344 = vmatpush1.msra.mxu0 0.0
      %1345 = vmatprep.subr.mxu0 0.0
      %1346 = vmatpush1.msra.mxu0 0.0
      %1347 = vmatprep.subr.mxu0 0.0
      %1348 = vmatpush1.msra.mxu0 0.0
      %1349 = vmatprep.subr.mxu0 0.0
      %1350 = vmatpush1.msra.mxu0 0.0
      %1351 = vmatprep.subr.mxu0 0.0
      %1352 = vmatpush1.msra.mxu0 0.0
      %1353 = vmatprep.subr.mxu0 0.0
      %1354 = vmatpush1.msra.mxu0 0.0
      %1355 = vmatprep.subr.mxu0 0.0
      %1356 = vmatpush1.msra.mxu0 0.0
      %1357 = vmatprep.subr.mxu0 0.0
      %1358 = vmatpush1.msra.mxu0 0.0
      %1359 = vmatprep.subr.mxu0 0.0
      %1360 = vmatpush1.msra.mxu0 0.0
      %1361 = vmatprep.subr.mxu0 0.0
      %1362 = vmatpush1.msra.mxu0 0.0
      %1363 = vmatprep.subr.mxu0 0.0
      %1364 = vmatpush1.msra.mxu0 0.0
      %1365 = vmatprep.subr.mxu0 0.0
      %1366 = vmatpush1.msra.mxu0 0.0
      %1367 = vmatprep.subr.mxu0 0.0
      %1368 = vmatpush1.msra.mxu0 0.0
      %1369 = vmatprep.subr.mxu0 0.0
      %1370 = vmatpush1.msra.mxu0 0.0
      %1371 = vmatprep.subr.mxu0 0.0
      %1372 = vmatpush1.msra.mxu0 0.0
      %1373 = vmatprep.subr.mxu0 0.0
      %1374 = vmatpush1.msra.mxu0 0.0
      %1375 = vmatprep.subr.mxu0 0.0
      %1376 = vmatpush1.msra.mxu0 0.0
      %1377 = vmatprep.subr.mxu0 0.0
      %1378 = vmatpush1.msra.mxu0 0.0
      %1379 = vmatprep.mubr.f32.mxu0 0.0
      %1380 = vmatmul.mubr.f32.gmra.mrb[0].mxu0 %v1301
      %v1381 = vpop.f32.mrb[0].mxu0
      %v1382 = vadd.f32 0.0, %v1381
      %v1383 = vpop.f32.mrb[0].mxu0
      %1384 = vmatprep.mubr.f32.mxu0 0.0
      %1385 = vmatmul.mubr.f32.gmra.mrb[0].mxu0 %v1304
      %v1386 = vpop.f32.mrb[0].mxu0
      %v1387 = vadd.f32 0.0, %v1386
      %v1388 = vpop.f32.mrb[0].mxu0
      %1389 = vmatprep.mubr.f32.mxu0 0.0
      %1390 = vmatmul.mubr.f32.gmra.mrb[0].mxu0 %v1307
      %v1391 = vpop.f32.mrb[0].mxu0
      %v1392 = vadd.f32 0.0, %v1391
      %v1393 = vpop.f32.mrb[0].mxu0
      %1394 = vmatprep.mubr.f32.mxu0 0.0
      %1395 = vmatmul.mubr.f32.gmra.mrb[0].mxu0 %v1310
      %v1396 = vpop.f32.mrb[0].mxu0
      %v1397 = vadd.f32 0.0, %v1396
      %v1398 = vpop.f32.mrb[0].mxu0
      %1399 = vdwg.mxu0
      %v1404 = vrot.slane %v1382, 1
      %v1405 = vrot.slane %v1387, 1
      %v1406 = vsel %vm959, %v1404, %v1405
      %v1407 = vrot.slane %v1392, 1
      %v1408 = vsel %vm959, %v1405, %v1407
      %v1409 = vrot.slane %v1397, 1
      %v1410 = vsel %vm959, %v1407, %v1409
      %v1415 = vmax.f32 %v1382, %v1406
      %v1416 = vmax.f32 %v1387, %v1408
      %v1417 = vmax.f32 %v1392, %v1410
      %v1418 = vmax.f32 %v1397, %v1409
      %v1419 = vsel %vm1299, %v1111, 0
      %v1422 = vsel %vm959, %v1416, 0
      %1424 = vmatprep.subr.mxu0 0.0
      %1425 = vmatpush1.msra.mxu0 %v1415
      %1426 = vmatprep.subr.mxu0 0.0
      %1427 = vmatpush1.msra.mxu0 %v1422
      %1428 = vmatprep.subr.mxu0 0.0
      %1429 = vmatpush1.msra.mxu0 0.0
      %1430 = vmatprep.subr.mxu0 0.0
      %1431 = vmatpush1.msra.mxu0 0.0
      %1432 = vmatprep.subr.mxu0 0.0
      %1433 = vmatpush1.msra.mxu0 0.0
      %1434 = vmatprep.subr.mxu0 0.0
      %1435 = vmatpush1.msra.mxu0 0.0
      %1436 = vmatprep.subr.mxu0 0.0
      %1437 = vmatpush1.msra.mxu0 0.0
      %1438 = vmatprep.subr.mxu0 0.0
      %1439 = vmatpush1.msra.mxu0 0.0
      %1440 = vmatprep.subr.mxu0 0.0
      %1441 = vmatpush1.msra.mxu0 0.0
      %1442 = vmatprep.subr.mxu0 0.0
      %1443 = vmatpush1.msra.mxu0 0.0
      %1444 = vmatprep.subr.mxu0 0.0
      %1445 = vmatpush1.msra.mxu0 0.0
      %1446 = vmatprep.subr.mxu0 0.0
      %1447 = vmatpush1.msra.mxu0 0.0
      %1448 = vmatprep.subr.mxu0 0.0
      %1449 = vmatpush1.msra.mxu0 0.0
      %1450 = vmatprep.subr.mxu0 0.0
      %1451 = vmatpush1.msra.mxu0 0.0
      %1452 = vmatprep.subr.mxu0 0.0
      %1453 = vmatpush1.msra.mxu0 0.0
      %1454 = vmatprep.subr.mxu0 0.0
      %1455 = vmatpush1.msra.mxu0 0.0
      %1456 = vmatprep.subr.mxu0 0.0
      %1457 = vmatpush1.msra.mxu0 0.0
      %1458 = vmatprep.subr.mxu0 0.0
      %1459 = vmatpush1.msra.mxu0 0.0
      %1460 = vmatprep.subr.mxu0 0.0
      %1461 = vmatpush1.msra.mxu0 0.0
      %1462 = vmatprep.subr.mxu0 0.0
      %1463 = vmatpush1.msra.mxu0 0.0
      %1464 = vmatprep.subr.mxu0 0.0
      %1465 = vmatpush1.msra.mxu0 0.0
      %1466 = vmatprep.subr.mxu0 0.0
      %1467 = vmatpush1.msra.mxu0 0.0
      %1468 = vmatprep.subr.mxu0 0.0
      %1469 = vmatpush1.msra.mxu0 0.0
      %1470 = vmatprep.subr.mxu0 0.0
      %1471 = vmatpush1.msra.mxu0 0.0
      %1472 = vmatprep.subr.mxu0 0.0
      %1473 = vmatpush1.msra.mxu0 0.0
      %1474 = vmatprep.subr.mxu0 0.0
      %1475 = vmatpush1.msra.mxu0 0.0
      %1476 = vmatprep.subr.mxu0 0.0
      %1477 = vmatpush1.msra.mxu0 0.0
      %1478 = vmatprep.subr.mxu0 0.0
      %1479 = vmatpush1.msra.mxu0 0.0
      %1480 = vmatprep.subr.mxu0 0.0
      %1481 = vmatpush1.msra.mxu0 0.0
      %1482 = vmatprep.subr.mxu0 0.0
      %1483 = vmatpush1.msra.mxu0 0.0
      %1484 = vmatprep.subr.mxu0 0.0
      %1485 = vmatpush1.msra.mxu0 0.0
      %1486 = vmatprep.subr.mxu0 0.0
      %1487 = vmatpush1.msra.mxu0 0.0
      %1488 = vmatprep.mubr.f32.mxu0 0.0
      %1489 = vmatmul.mubr.f32.gmra.mrb[0].mxu0 %v1419
      %v1490 = vpop.f32.mrb[0].mxu0
      %v1491 = vadd.f32 0.0, %v1490
      %v1492 = vpop.f32.mrb[0].mxu0
      %1493 = vdwg.mxu0
      %v1495 = vsel %vm959, %v1418, 0
      %1497 = vmatprep.subr.mxu0 0.0
      %1498 = vmatpush1.msra.mxu0 %v1417
      %1499 = vmatprep.subr.mxu0 0.0
      %1500 = vmatpush1.msra.mxu0 %v1495
      %1501 = vmatprep.subr.mxu0 0.0
      %1502 = vmatpush1.msra.mxu0 0.0
      %1503 = vmatprep.subr.mxu0 0.0
      %1504 = vmatpush1.msra.mxu0 0.0
      %1505 = vmatprep.subr.mxu0 0.0
      %1506 = vmatpush1.msra.mxu0 0.0
      %1507 = vmatprep.subr.mxu0 0.0
      %1508 = vmatpush1.msra.mxu0 0.0
      %1509 = vmatprep.subr.mxu0 0.0
      %1510 = vmatpush1.msra.mxu0 0.0
      %1511 = vmatprep.subr.mxu0 0.0
      %1512 = vmatpush1.msra.mxu0 0.0
      %1513 = vmatprep.subr.mxu0 0.0
      %1514 = vmatpush1.msra.mxu0 0.0
      %1515 = vmatprep.subr.mxu0 0.0
      %1516 = vmatpush1.msra.mxu0 0.0
      %1517 = vmatprep.subr.mxu0 0.0
      %1518 = vmatpush1.msra.mxu0 0.0
      %1519 = vmatprep.subr.mxu0 0.0
      %1520 = vmatpush1.msra.mxu0 0.0
      %1521 = vmatprep.subr.mxu0 0.0
      %1522 = vmatpush1.msra.mxu0 0.0
      %1523 = vmatprep.subr.mxu0 0.0
      %1524 = vmatpush1.msra.mxu0 0.0
      %1525 = vmatprep.subr.mxu0 0.0
      %1526 = vmatpush1.msra.mxu0 0.0
      %1527 = vmatprep.subr.mxu0 0.0
      %1528 = vmatpush1.msra.mxu0 0.0
      %1529 = vmatprep.subr.mxu0 0.0
      %1530 = vmatpush1.msra.mxu0 0.0
      %1531 = vmatprep.subr.mxu0 0.0
      %1532 = vmatpush1.msra.mxu0 0.0
      %1533 = vmatprep.subr.mxu0 0.0
      %1534 = vmatpush1.msra.mxu0 0.0
      %1535 = vmatprep.subr.mxu0 0.0
      %1536 = vmatpush1.msra.mxu0 0.0
      %1537 = vmatprep.subr.mxu0 0.0
      %1538 = vmatpush1.msra.mxu0 0.0
      %1539 = vmatprep.subr.mxu0 0.0
      %1540 = vmatpush1.msra.mxu0 0.0
      %1541 = vmatprep.subr.mxu0 0.0
      %1542 = vmatpush1.msra.mxu0 0.0
      %1543 = vmatprep.subr.mxu0 0.0
      %1544 = vmatpush1.msra.mxu0 0.0
      %1545 = vmatprep.subr.mxu0 0.0
      %1546 = vmatpush1.msra.mxu0 0.0
      %1547 = vmatprep.subr.mxu0 0.0
      %1548 = vmatpush1.msra.mxu0 0.0
      %1549 = vmatprep.subr.mxu0 0.0
      %1550 = vmatpush1.msra.mxu0 0.0
      %1551 = vmatprep.subr.mxu0 0.0
      %1552 = vmatpush1.msra.mxu0 0.0
      %1553 = vmatprep.subr.mxu0 0.0
      %1554 = vmatpush1.msra.mxu0 0.0
      %1555 = vmatprep.subr.mxu0 0.0
      %1556 = vmatpush1.msra.mxu0 0.0
      %1557 = vmatprep.subr.mxu0 0.0
      %1558 = vmatpush1.msra.mxu0 0.0
      %1559 = vmatprep.subr.mxu0 0.0
      %1560 = vmatpush1.msra.mxu0 0.0
      %1561 = vmatprep.mubr.f32.mxu0 0.0
      %1562 = vmatmul.mubr.f32.gmra.mrb[0].mxu0 %v1419
      %v1563 = vpop.f32.mrb[0].mxu0
      %v1564 = vadd.f32 0.0, %v1563
      %v1565 = vpop.f32.mrb[0].mxu0
      %1566 = vdwg.mxu0
      %1567 = vst.msk [vmem:[%s405] sm:$0xff] %vm664, %v1491
      %1568 = vst.msk [vmem:[%s405 + $0x8] sm:$0xff] %vm664, %v1564
      %s1569 = smul.u32 8, %s21
      %p1570 = scmp.lt.s32.totalorder %s1569, 31
      %s1571 = scalar_select %p1570, %s1569, 31
      %s1572 = smul.addr %s1571, 8
      %s1573 = scalar_lea.vmem %s7, %s1572
      %s1574 = smul.u32 4, %s21
      %p1575 = scmp.lt.s32.totalorder %s1574, 15
      %s1576 = scalar_select %p1575, %s1574, 15
      %s1577 = smul.addr %s1576, 8
      %s1578 = scalar_lea.vmem %s8, %s1577
      %s1579 = smul.u32 2, %s21
      %p1580 = scmp.lt.s32.totalorder %s1579, 7
      %s1581 = scalar_select %p1580, %s1579, 7
      %s1582 = smul.addr %s1581, 8
      %s1583 = scalar_lea.vmem %s9, %s1582
      // Predicated region
      $region49: #{tpu_custom_call.1} parent=47 // pred_check
        %p1584 = pneg %p201
      $region50: #{tpu_custom_call.1} parent=47 // pred_check_branch
        %1586 = sbr.rel (%p1584) target = $region52
      $region51: #{tpu_custom_call.1} parent=47 // pred_region
        %s1587 = smul.u32 8, %s21
      $region52: #{tpu_custom_call.1} parent=47 // pred_fallthru
        _
      // Predicated region
      $region53: #{tpu_custom_call.1} parent=47 // pred_check
        %p1588 = pneg %p227
      $region54: #{tpu_custom_call.1} parent=47 // pred_check_branch
        %1590 = sbr.rel (%p1588) target = $region56
      $region55: #{tpu_custom_call.1} parent=47 // pred_region
        %s1591 = smul.u32 4, %s21
      $region56: #{tpu_custom_call.1} parent=47 // pred_fallthru
        _
      // Predicated region
      $region57: #{tpu_custom_call.1} parent=47 // pred_check
        %p1592 = pneg %p253
      $region58: #{tpu_custom_call.1} parent=47 // pred_check_branch
        %1594 = sbr.rel (%p1592) target = $region60
      $region59: #{tpu_custom_call.1} parent=47 // pred_region
        %s1595 = smul.u32 2, %s21
      $region60: #{tpu_custom_call.1} parent=47 // pred_fallthru
        _
    $region48: #{tpu_custom_call.1} parent=5 // pred_fallthru
      _
    %p1596 = scmp.le.s32.totalorder 2, %s16
    // Predicated region
    $region61: #{tpu_custom_call.1} parent=5 // pred_check
      %p1597 = pneg %p1596
    $region62: #{tpu_custom_call.1} parent=5 // pred_check_branch
      %1599 = sbr.rel (%p1597) target = $region64
    $region63: #{tpu_custom_call.1} parent=5 // pred_region
      %s1600 = ssub.s32 %s16, 2
      // Predicated region
      $region65: #{tpu_custom_call.1} parent=63 // pred_check
        %p1601 = pneg %p207
      $region66: #{tpu_custom_call.1} parent=63 // pred_check_branch
        %1603 = sbr.rel (%p1601) target = $region68
      $region67: #{tpu_custom_call.1} parent=63 // pred_region
        %s1604 = smul.u32 8, %s22
        %p1605 = scmp.lt.s32.totalorder %s1604, 31
        %s1606 = scalar_select %p1605, %s1604, 31
        %s1607 = smul.addr %s1606, 8
        %s1608 = scalar_lea.vmem %s7, %s1607
      $region68: #{tpu_custom_call.1} parent=63 // pred_fallthru
        _
      // Predicated region
      $region69: #{tpu_custom_call.1} parent=63 // pred_check
        %p1609 = pneg %p233
      $region70: #{tpu_custom_call.1} parent=63 // pred_check_branch
        %1611 = sbr.rel (%p1609) target = $region72
      $region71: #{tpu_custom_call.1} parent=63 // pred_region
        %s1612 = smul.u32 4, %s22
        %p1613 = scmp.lt.s32.totalorder %s1612, 15
        %s1614 = scalar_select %p1613, %s1612, 15
        %s1615 = smul.addr %s1614, 8
        %s1616 = scalar_lea.vmem %s8, %s1615
      $region72: #{tpu_custom_call.1} parent=63 // pred_fallthru
        _
      // Predicated region
      $region73: #{tpu_custom_call.1} parent=63 // pred_check
        %p1617 = pneg %p259
      $region74: #{tpu_custom_call.1} parent=63 // pred_check_branch
        %1619 = sbr.rel (%p1617) target = $region76
      $region75: #{tpu_custom_call.1} parent=63 // pred_region
        %s1620 = smul.u32 2, %s22
        %p1621 = scmp.lt.s32.totalorder %s1620, 7
        %s1622 = scalar_select %p1621, %s1620, 7
        %s1623 = smul.addr %s1622, 8
        %s1624 = scalar_lea.vmem %s9, %s1623
      $region76: #{tpu_custom_call.1} parent=63 // pred_fallthru
        _
    $region64: #{tpu_custom_call.1} parent=5 // pred_fallthru
      _
  $region6: #{tpu_custom_call.1} parent=0 // loop_footer
    %s20 = sadd.s32 1, %s16
  $region7: #{tpu_custom_call.1} parent=0 // loop_footer_branch
    %15 = sbr.rel target = $region3
  $region8: #{tpu_custom_call.1} parent=0 // loop_exit
    _

</llo_original>
